<compile_context>
chip_gen: v7x
topology: tpu7x:2x2x1
jax: 0.10.0
libtpu: 0.0.40
codegen_flags: <defaults>
</compile_context>

<pallas_src>
import math
import functools

import jax
import jax.numpy as jnp
from jax import lax
from jax.experimental import pallas as pl
from jax.experimental.pallas import tpu as pltpu


def _layer_norm(x, gamma, beta, eps=1e-5):
    mu = jnp.mean(x, axis=-1, keepdims=True)
    var = jnp.mean((x - mu) ** 2, axis=-1, keepdims=True)
    return (x - mu) * lax.rsqrt(var + eps) * gamma + beta


# ---------------------------------------------------------------------------
# Pallas kernel: one encoder layer per grid step; activations carried in out_ref
# across the (innermost) layer grid axis.
# ---------------------------------------------------------------------------
def _encoder_kernel(x_ref, bias_ref,
                    wqkv_ref, bqkv_ref, wo_ref, bo_ref, g1_ref, be1_ref,
                    w1_ref, b1_ref, w2_ref, b2_ref, g2_ref, be2_ref,
                    out_ref,
                    attn_buf,
                    *, num_heads, seq_len, mxu_dtype, approx_recip):
    layer = pl.program_id(1)

    # Layer 0: load the input activations into the resident output block.
    @pl.when(layer == 0)
    def _():
        out_ref[...] = x_ref[...]

    x = out_ref[...]                       # (R, D) f32, R = Bt * S
    R, D = x.shape
    S = seq_len
    Bt = R // S
    H = num_heads
    dh = D // H

    bias = bias_ref[...]                   # (Bt, 1, S) additive key-padding bias (f32)

    # --- self attention: ONE fused QKV matmul (M = R rows, N = 3D on the MXU) ---
    # 1/sqrt(dh) is already folded into the q-columns of wqkv / bqkv (host-side).
    xc = x.astype(mxu_dtype)
    qkv = jnp.dot(xc, wqkv_ref[...], preferred_element_type=jnp.float32) + bqkv_ref[...]
    q3 = qkv[:, :D].reshape(Bt, S, D)      # leading-dim split only: no relayout
    k3 = qkv[:, D:2 * D].reshape(Bt, S, D)
    v3 = qkv[:, 2 * D:].reshape(Bt, S, D)

    # Per-head attention, batched over the batch tile with 3-D einsums (batch dim
    # leading, contraction on the last dims -> no XLU transposes). Only H iterations
    # unroll at trace time (vs. Bt*H before).
    for h in range(H):
        cols = slice(h * dh, (h + 1) * dh)
        qh = q3[:, :, cols].astype(mxu_dtype)              # (Bt, S, dh)
        kh = k3[:, :, cols].astype(mxu_dtype)
        vh = v3[:, :, cols].astype(mxu_dtype)
        s = jnp.einsum('bqd,bkd->bqk', qh, kh,
                       preferred_element_type=jnp.float32)  # (Bt, S, S)
        s = s + bias                                         # broadcast over query rows
        m = jnp.max(s, axis=-1, keepdims=True)
        p = jnp.exp(s - m)
        denom = jnp.sum(p, axis=-1, keepdims=True)
        if approx_recip:
            p = p * pl.reciprocal(denom, approx=True)        # EUP, frees VALU slots
        else:
            p = p / denom
        ctx = jnp.einsum('bqk,bkd->bqd', p.astype(mxu_dtype), vh,
                         preferred_element_type=jnp.float32)  # (Bt, S, dh)
        attn_buf[:, cols] = ctx.reshape(R, dh).astype(mxu_dtype)

    # Output projection reads the bf16 scratch directly (no extra cast).
    o = jnp.dot(attn_buf[...], wo_ref[...],
                preferred_element_type=jnp.float32) + bo_ref[...]

    # dropout is identity (eval-mode forward)
    x1 = _layer_norm(x + o, g1_ref[...], be1_ref[...])

    # --- feed-forward (relu), fused over the whole row block ---
    hdn = jnp.dot(x1.astype(mxu_dtype), w1_ref[...],
                  preferred_element_type=jnp.float32) + b1_ref[...]
    hdn = jnp.maximum(hdn, 0.0)
    ff = jnp.dot(hdn.astype(mxu_dtype), w2_ref[...],
                 preferred_element_type=jnp.float32) + b2_ref[...]

    out_ref[...] = _layer_norm(x1 + ff, g2_ref[...], be2_ref[...])


# ---------------------------------------------------------------------------
# Wrapper helpers
# ---------------------------------------------------------------------------
def _pick_batch_tile(batch, seq, target_rows=512):
    """Largest divisor of `batch` keeping Bt*S <= target_rows, with 8-row alignment
    unless the tile covers the whole batch (full-dim blocks are always legal)."""
    best = 1
    for cand in range(1, batch + 1):
        if batch % cand != 0:
            continue
        rows = cand * seq
        if rows > max(target_rows, seq):
            continue
        if cand != batch and rows % 8 != 0:
            continue
        best = cand
    if best != batch and (best * seq) % 8 != 0:
        best = batch
    return best


def _vmem_limit_bytes():
    """7/8 of physical VMEM (~112 MiB on v5e/v6e, ~56 MiB on v7x); 64 MiB fallback."""
    try:
        phys = int(pltpu.get_tpu_info().vmem_capacity_bytes)
        return max(32 * 1024 * 1024, phys - phys // 8)
    except Exception:
        return 64 * 1024 * 1024


def _prepare_weights(params, num_heads, mxu_dtype):
    """Stack per-layer params over the layer axis; fuse QKV and fold 1/sqrt(dh) into
    the q columns; matmul weights stored in bf16 (MXU rate, half the HBM/VMEM bytes)."""
    d_model = params[0]['wq'].shape[0]
    dh = d_model // num_heads
    scale = 1.0 / math.sqrt(dh)

    wqkv, bqkv = [], []
    rest_names = ('wo', 'bo', 'g1', 'be1', 'w1', 'b1', 'w2', 'b2', 'g2', 'be2')
    rest = {k: [] for k in rest_names}
    for p in params:
        wqkv.append(jnp.concatenate([p['wq'] * scale, p['wk'], p['wv']], axis=1))
        bqkv.append(jnp.concatenate([p['bq'] * scale, p['bk'], p['bv']], axis=1))
        for k in rest_names:
            rest[k].append(p[k])

    weights = [jnp.stack(wqkv).astype(mxu_dtype), jnp.stack(bqkv)]
    for k in rest_names:
        arr = jnp.stack(rest[k])
        if k in ('wo', 'w1', 'w2'):
            arr = arr.astype(mxu_dtype)
        weights.append(arr)
    return weights


def transformer_forward(x, mask, params, num_heads, *,
                        mxu_dtype=jnp.bfloat16, target_rows=512,
                        use_approx_reciprocal=True):
    """x: (B, S, D) float32, mask: (B, S) (nonzero = valid token)."""
    B, S, D = x.shape
    L = len(params)
    assert D % num_heads == 0

    Bt = _pick_batch_tile(B, S, target_rows)
    n_bt = B // Bt
    R = Bt * S

    x_flat = x.reshape(B * S, D).astype(jnp.float32)
    # Additive key-padding bias (must stay f32: -1e30 would overflow bf16).
    bias = jnp.where(mask == 0, -1e30, 0.0).astype(jnp.float32).reshape(B, 1, S)

    weights = _prepare_weights(params, num_heads, mxu_dtype)

    def wspec(arr):
        nd = arr.ndim
        # Leading layer dim squeezed (None) -> kernel sees a 2-D weight ref.
        return pl.BlockSpec((None,) + arr.shape[1:],
                            lambda bt, l, _nd=nd: (l,) + (0,) * (_nd - 1))

    in_specs = ([pl.BlockSpec((R, D), lambda bt, l: (bt, 0)),
                 pl.BlockSpec((Bt, 1, S), lambda bt, l: (bt, 0, 0))]
                + [wspec(w) for w in weights])
    # Output block index constant across the layer axis -> activations stay resident
    # in VMEM across all layers of a batch tile.
    out_spec = pl.BlockSpec((R, D), lambda bt, l: (bt, 0))

    kernel = functools.partial(_encoder_kernel, num_heads=num_heads,
                               seq_len=S, mxu_dtype=mxu_dtype,
                               approx_recip=use_approx_reciprocal)

    out_flat = pl.pallas_call(
        kernel,
        out_shape=jax.ShapeDtypeStruct((B * S, D), jnp.float32),
        grid=(n_bt, L),
        in_specs=in_specs,
        out_specs=out_spec,
        scratch_shapes=[pltpu.VMEM((R, D), mxu_dtype)],   # bf16 attention scratch
        compiler_params=pltpu.CompilerParams(
            dimension_semantics=("parallel", "arbitrary"),
            vmem_limit_bytes=_vmem_limit_bytes()),
    )(x_flat, bias, *weights)
    return out_flat.reshape(B, S, D)


# ---------------------------------------------------------------------------
# Deterministic parameter initialisation (shapes follow nn.TransformerEncoderLayer).
# Weights are stored pre-transposed as (in_dim, out_dim) for x @ W inside the kernel.
# ---------------------------------------------------------------------------
def init_params(key, num_layers, d_model, num_heads, dim_feedforward):
    params = []
    for l in range(num_layers):
        k = jax.random.fold_in(key, l)
        ks = jax.random.split(k, 6)
        in_proj_w = jax.random.normal(ks[0], (3 * d_model, d_model), jnp.float32) * 0.05
        in_proj_b = jax.random.normal(ks[1], (3 * d_model,), jnp.float32) * 0.05
        out_proj_w = jax.random.normal(ks[2], (d_model, d_model), jnp.float32) * 0.05
        out_proj_b = jax.random.normal(ks[3], (d_model,), jnp.float32) * 0.05
        w1 = jax.random.normal(ks[4], (dim_feedforward, d_model), jnp.float32) * 0.05
        b1 = jnp.zeros((dim_feedforward,), jnp.float32)
        w2 = jax.random.normal(ks[5], (d_model, dim_feedforward), jnp.float32) * 0.05
        b2 = jnp.zeros((d_model,), jnp.float32)
        wq, wk, wv = jnp.split(in_proj_w, 3, axis=0)
        bq, bk, bv = jnp.split(in_proj_b, 3, axis=0)
        layer = dict(
            wq=wq.T, bq=bq.reshape(1, -1),
            wk=wk.T, bk=bk.reshape(1, -1),
            wv=wv.T, bv=bv.reshape(1, -1),
            wo=out_proj_w.T, bo=out_proj_b.reshape(1, -1),
            g1=jnp.ones((1, d_model), jnp.float32), be1=jnp.zeros((1, d_model), jnp.float32),
            w1=w1.T, b1=b1.reshape(1, -1),
            w2=w2.T, b2=b2.reshape(1, -1),
            g2=jnp.ones((1, d_model), jnp.float32), be2=jnp.zeros((1, d_model), jnp.float32),
        )
        params.append(layer)
    return params


# ---------------------------------------------------------------------------
# Pure-JAX reference (same math; mxu_dtype mirrors the kernel's MXU-input casts,
# including the host-side 1/sqrt(dh) fold into wq/bq before the bf16 cast).
# ---------------------------------------------------------------------------
def _ref_layer(x, mask, p, H, mxu_dtype):
    B, S, D = x.shape
    dh = D // H
    scale = 1.0 / math.sqrt(dh)
    c = lambda a: a.astype(mxu_dtype)

    def mm(a, w):
        return jnp.einsum('...ij,jk->...ik', c(a), c(w),
                          preferred_element_type=jnp.float32)

    q = mm(x, p['wq'] * scale) + p['bq'] * scale
    k = mm(x, p['wk']) + p['bk']
    v = mm(x, p['wv']) + p['bv']
    qh = q.reshape(B, S, H, dh).transpose(0, 2, 1, 3)
    kh = k.reshape(B, S, H, dh).transpose(0, 2, 1, 3)
    vh = v.reshape(B, S, H, dh).transpose(0, 2, 1, 3)
    scores = jnp.einsum('bhqd,bhkd->bhqk', c(qh), c(kh),
                        preferred_element_type=jnp.float32)
    scores = jnp.where(mask[:, None, None, :] == 0.0, -1e30, scores)
    attn = jax.nn.softmax(scores, axis=-1)
    ctx = jnp.einsum('bhqk,bhkd->bhqd', c(attn), c(vh),
                     preferred_element_type=jnp.float32)
    ctx = ctx.transpose(0, 2, 1, 3).reshape(B, S, D)
    o = mm(ctx, p['wo']) + p['bo']
    x1 = _layer_norm(x + o, p['g1'], p['be1'])
    hdn = jnp.maximum(mm(x1, p['w1']) + p['b1'], 0.0)
    ff = mm(hdn, p['w2']) + p['b2']
    return _layer_norm(x1 + ff, p['g2'], p['be2'])


def transformer_forward_ref(x, mask, params, num_heads, mxu_dtype=jnp.bfloat16):
    m = mask.astype(jnp.float32)
    for p in params:
        x = _ref_layer(x, m, p, num_heads, mxu_dtype)
    return x


if __name__ == "__main__":
    B, S, D = 2, 8, 32          # batch, seq, input_dim
    H = 4                        # num_heads
    FF = 64                      # hidden_dim (dim_feedforward)
    L = 2                        # num_layers

    key = jax.random.PRNGKey(0)
    kx, kp = jax.random.split(key)
    x = jax.random.normal(kx, (B, S, D), jnp.float32)
    # mask: nonzero = valid token; last two positions of batch element 1 are padding.
    mask = jnp.ones((B, S), jnp.float32).at[1, S - 2:].set(0.0)

    params = init_params(kp, L, D, H, FF)

    out = transformer_forward(x, mask, params, H)
    out = jax.block_until_ready(out)
    assert out.shape == (B, S, D)

    # Reference mirroring the kernel's bf16 MXU-input casts (tight check) and the pure
    # f32 module semantics (loose check; bf16 weight rounding + approx reciprocal).
    ref_mirror = transformer_forward_ref(x, mask, params, H, mxu_dtype=jnp.bfloat16)
    ref_f32 = transformer_forward_ref(x, mask, params, H, mxu_dtype=jnp.float32)
    err_mirror = float(jnp.max(jnp.abs(out - ref_mirror)))
    err_f32 = float(jnp.max(jnp.abs(out - ref_f32)))
    assert err_mirror < 5e-3, f"mismatch vs bf16-matmul reference: {err_mirror}"
    assert err_f32 < 5e-2, f"mismatch vs f32 reference: {err_f32}"

    print("KERNEL_OK")
</pallas_src>

<mosaic_0001>
module attributes {stable_mosaic.version = 11 : i64} {
  func.func @_encoder_kernel(%arg0: i32, %arg1: i32, %arg2: memref<16x32xf32, #tpu.memory_space<vmem>>, %arg3: memref<2x1x8xf32, #tpu.memory_space<vmem>>, %arg4: memref<1x32x96xbf16, #tpu.memory_space<vmem>>, %arg5: memref<1x1x96xf32, #tpu.memory_space<vmem>>, %arg6: memref<1x32x32xbf16, #tpu.memory_space<vmem>>, %arg7: memref<1x1x32xf32, #tpu.memory_space<vmem>>, %arg8: memref<1x1x32xf32, #tpu.memory_space<vmem>>, %arg9: memref<1x1x32xf32, #tpu.memory_space<vmem>>, %arg10: memref<1x32x64xbf16, #tpu.memory_space<vmem>>, %arg11: memref<1x1x64xf32, #tpu.memory_space<vmem>>, %arg12: memref<1x64x32xbf16, #tpu.memory_space<vmem>>, %arg13: memref<1x1x32xf32, #tpu.memory_space<vmem>>, %arg14: memref<1x1x32xf32, #tpu.memory_space<vmem>>, %arg15: memref<1x1x32xf32, #tpu.memory_space<vmem>>, %arg16: memref<16x32xf32, #tpu.memory_space<vmem>>, %arg17: memref<16x32xbf16, #tpu.memory_space<vmem>>) attributes {dimension_semantics = [#tpu.dimension_semantics<parallel>, #tpu.dimension_semantics<arbitrary>], iteration_bounds = array<i64: 1, 2>, scalar_prefetch = 0 : i64, scratch_operands = 1 : i64, tpu.core_type = #tpu.core_type<tc>, window_params = [{transform_indices = @transform_0, window_bounds = array<i64: 16, 32>}, {transform_indices = @transform_1, window_bounds = array<i64: 2, 1, 8>}, {transform_indices = @transform_2, window_bounds = array<i64: 1, 32, 96>}, {transform_indices = @transform_3, window_bounds = array<i64: 1, 1, 96>}, {transform_indices = @transform_4, window_bounds = array<i64: 1, 32, 32>}, {transform_indices = @transform_5, window_bounds = array<i64: 1, 1, 32>}, {transform_indices = @transform_6, window_bounds = array<i64: 1, 1, 32>}, {transform_indices = @transform_7, window_bounds = array<i64: 1, 1, 32>}, {transform_indices = @transform_8, window_bounds = array<i64: 1, 32, 64>}, {transform_indices = @transform_9, window_bounds = array<i64: 1, 1, 64>}, {transform_indices = @transform_10, window_bounds = array<i64: 1, 64, 32>}, {transform_indices = @transform_11, window_bounds = array<i64: 1, 1, 32>}, {transform_indices = @transform_12, window_bounds = array<i64: 1, 1, 32>}, {transform_indices = @transform_13, window_bounds = array<i64: 1, 1, 32>}, {transform_indices = @transform_14, window_bounds = array<i64: 16, 32>}]} {
    %c0_i32 = arith.constant 0 : i32
    %0 = arith.cmpi eq, %arg1, %c0_i32 : i32
    %1 = arith.extui %0 : i1 to i32
    %c0_i32_0 = arith.constant 0 : i32
    %2 = arith.cmpi ne, %1, %c0_i32_0 : i32
    scf.if %2 {
      %c0_80 = arith.constant 0 : index
      %c0_81 = arith.constant 0 : index
      %196 = vector.load %arg2[%c0_80, %c0_81] : memref<16x32xf32, #tpu.memory_space<vmem>>, vector<16x32xf32>
      %c0_82 = arith.constant 0 : index
      %c0_83 = arith.constant 0 : index
      %197 = vector.load %arg16[%c0_82, %c0_83] : memref<16x32xf32, #tpu.memory_space<vmem>>, vector<16x32xf32>
      tpu.vector_store %arg16[%c0_82, %c0_83], %196 {strides = array<i32>} : memref<16x32xf32, #tpu.memory_space<vmem>>, vector<16x32xf32>,
    } else {
    }
    %c0 = arith.constant 0 : index
    %c0_1 = arith.constant 0 : index
    %3 = vector.load %arg16[%c0, %c0_1] : memref<16x32xf32, #tpu.memory_space<vmem>>, vector<16x32xf32>
    %c0_2 = arith.constant 0 : index
    %c0_3 = arith.constant 0 : index
    %c0_4 = arith.constant 0 : index
    %4 = vector.load %arg3[%c0_2, %c0_3, %c0_4] : memref<2x1x8xf32, #tpu.memory_space<vmem>>, vector<2x1x8xf32>
    %5 = arith.truncf %3 : vector<16x32xf32> to vector<16x32xbf16>
    %c0_5 = arith.constant 0 : index
    %c0_6 = arith.constant 0 : index
    %c0_7 = arith.constant 0 : index
    %6 = vector.load %arg4[%c0_5, %c0_6, %c0_7] : memref<1x32x96xbf16, #tpu.memory_space<vmem>>, vector<1x32x96xbf16>
    %7 = vector.shape_cast %6 : vector<1x32x96xbf16> to vector<32x96xbf16>
    %cst = arith.constant dense<0.000000e+00> : vector<16x96xf32>
    %8 = tpu.matmul %5, %7, %cst {dimension_numbers = #tpu.dot_dimension_numbers<[1], [0], [0], [1], [0, 0, 1, 1], [], []>} : vector<16x32xbf16>, vector<32x96xbf16>, vector<16x96xf32> -> vector<16x96xf32>
    %c0_8 = arith.constant 0 : index
    %c0_9 = arith.constant 0 : index
    %c0_10 = arith.constant 0 : index
    %9 = vector.load %arg5[%c0_8, %c0_9, %c0_10] : memref<1x1x96xf32, #tpu.memory_space<vmem>>, vector<1x1x96xf32>
    %10 = vector.shape_cast %9 : vector<1x1x96xf32> to vector<1x96xf32>
    %11 = vector.broadcast %10 : vector<1x96xf32> to vector<16x96xf32>
    %12 = arith.addf %8, %11 : vector<16x96xf32>
    %13 = vector.extract_strided_slice %12 {offsets = [0, 0], sizes = [16, 32], strides = [1, 1]} : vector<16x96xf32> to vector<16x32xf32>
    %14 = vector.shape_cast %13 : vector<16x32xf32> to vector<2x8x32xf32>
    %15 = vector.extract_strided_slice %12 {offsets = [0, 32], sizes = [16, 32], strides = [1, 1]} : vector<16x96xf32> to vector<16x32xf32>
    %16 = vector.shape_cast %15 : vector<16x32xf32> to vector<2x8x32xf32>
    %17 = vector.extract_strided_slice %12 {offsets = [0, 64], sizes = [16, 32], strides = [1, 1]} : vector<16x96xf32> to vector<16x32xf32>
    %18 = vector.shape_cast %17 : vector<16x32xf32> to vector<2x8x32xf32>
    %19 = vector.extract_strided_slice %14 {offsets = [0, 0, 0], sizes = [2, 8, 8], strides = [1, 1, 1]} : vector<2x8x32xf32> to vector<2x8x8xf32>
    %20 = arith.truncf %19 : vector<2x8x8xf32> to vector<2x8x8xbf16>
    %21 = vector.extract_strided_slice %16 {offsets = [0, 0, 0], sizes = [2, 8, 8], strides = [1, 1, 1]} : vector<2x8x32xf32> to vector<2x8x8xf32>
    %22 = arith.truncf %21 : vector<2x8x8xf32> to vector<2x8x8xbf16>
    %23 = vector.extract_strided_slice %18 {offsets = [0, 0, 0], sizes = [2, 8, 8], strides = [1, 1, 1]} : vector<2x8x32xf32> to vector<2x8x8xf32>
    %24 = arith.truncf %23 : vector<2x8x8xf32> to vector<2x8x8xbf16>
    "tpu.trace_start"() <{level = 10 : i32, message = "bqd,bkd->bqk"}> : () -> ()
    %cst_11 = arith.constant dense<0.000000e+00> : vector<2x8x8xf32>
    %25 = tpu.matmul %20, %22, %cst_11 {dimension_numbers = #tpu.dot_dimension_numbers<[2], [2], [1], [1], [0, 0, 0, 1, 1, 1], [0], [0]>} : vector<2x8x8xbf16>, vector<2x8x8xbf16>, vector<2x8x8xf32> -> vector<2x8x8xf32>
    "tpu.trace_stop"() : () -> ()
    %26 = vector.broadcast %4 : vector<2x1x8xf32> to vector<2x8x8xf32>
    %27 = arith.addf %25, %26 : vector<2x8x8xf32>
    %cst_12 = arith.constant dense<0xFF800000> : vector<2x8xf32>
    %28 = vector.multi_reduction <maximumf>, %27, %cst_12 [2] : vector<2x8x8xf32> to vector<2x8xf32>
    %29 = vector.shape_cast %28 : vector<2x8xf32> to vector<2x8x1xf32>
    %30 = vector.broadcast %29 : vector<2x8x1xf32> to vector<2x8x8xf32>
    %31 = arith.subf %27, %30 : vector<2x8x8xf32>
    %32 = math.exp %31 : vector<2x8x8xf32>
    %cst_13 = arith.constant dense<0.000000e+00> : vector<2x8xf32>
    %33 = vector.multi_reduction <add>, %32, %cst_13 [2] : vector<2x8x8xf32> to vector<2x8xf32>
    %34 = vector.shape_cast %33 : vector<2x8xf32> to vector<2x8x1xf32>
    %35 = tpu.reciprocal %34 {approx = true} : vector<2x8x1xf32> -> vector<2x8x1xf32>
    %36 = vector.broadcast %35 : vector<2x8x1xf32> to vector<2x8x8xf32>
    %37 = arith.mulf %32, %36 : vector<2x8x8xf32>
    %38 = arith.truncf %37 : vector<2x8x8xf32> to vector<2x8x8xbf16>
    "tpu.trace_start"() <{level = 10 : i32, message = "bqk,bkd->bqd"}> : () -> ()
    %cst_14 = arith.constant dense<0.000000e+00> : vector<2x8x8xf32>
    %39 = tpu.matmul %38, %24, %cst_14 {dimension_numbers = #tpu.dot_dimension_numbers<[2], [1], [1], [2], [0, 0, 0, 1, 1, 2], [0], [0]>} : vector<2x8x8xbf16>, vector<2x8x8xbf16>, vector<2x8x8xf32> -> vector<2x8x8xf32>
    "tpu.trace_stop"() : () -> ()
    %40 = vector.shape_cast %39 : vector<2x8x8xf32> to vector<16x8xf32>
    %41 = arith.truncf %40 : vector<16x8xf32> to vector<16x8xbf16>
    %c0_15 = arith.constant 0 : index
    %c0_16 = arith.constant 0 : index
    %42 = vector.load %arg17[%c0_15, %c0_16] : memref<16x32xbf16, #tpu.memory_space<vmem>>, vector<16x8xbf16>
    tpu.vector_store %arg17[%c0_15, %c0_16], %41 {strides = array<i32>} : memref<16x32xbf16, #tpu.memory_space<vmem>>, vector<16x8xbf16>,
    %43 = vector.extract_strided_slice %14 {offsets = [0, 0, 8], sizes = [2, 8, 8], strides = [1, 1, 1]} : vector<2x8x32xf32> to vector<2x8x8xf32>
    %44 = arith.truncf %43 : vector<2x8x8xf32> to vector<2x8x8xbf16>
    %45 = vector.extract_strided_slice %16 {offsets = [0, 0, 8], sizes = [2, 8, 8], strides = [1, 1, 1]} : vector<2x8x32xf32> to vector<2x8x8xf32>
    %46 = arith.truncf %45 : vector<2x8x8xf32> to vector<2x8x8xbf16>
    %47 = vector.extract_strided_slice %18 {offsets = [0, 0, 8], sizes = [2, 8, 8], strides = [1, 1, 1]} : vector<2x8x32xf32> to vector<2x8x8xf32>
    %48 = arith.truncf %47 : vector<2x8x8xf32> to vector<2x8x8xbf16>
    "tpu.trace_start"() <{level = 10 : i32, message = "bqd,bkd->bqk"}> : () -> ()
    %cst_17 = arith.constant dense<0.000000e+00> : vector<2x8x8xf32>
    %49 = tpu.matmul %44, %46, %cst_17 {dimension_numbers = #tpu.dot_dimension_numbers<[2], [2], [1], [1], [0, 0, 0, 1, 1, 1], [0], [0]>} : vector<2x8x8xbf16>, vector<2x8x8xbf16>, vector<2x8x8xf32> -> vector<2x8x8xf32>
    "tpu.trace_stop"() : () -> ()
    %50 = vector.broadcast %4 : vector<2x1x8xf32> to vector<2x8x8xf32>
    %51 = arith.addf %49, %50 : vector<2x8x8xf32>
    %cst_18 = arith.constant dense<0xFF800000> : vector<2x8xf32>
    %52 = vector.multi_reduction <maximumf>, %51, %cst_18 [2] : vector<2x8x8xf32> to vector<2x8xf32>
    %53 = vector.shape_cast %52 : vector<2x8xf32> to vector<2x8x1xf32>
    %54 = vector.broadcast %53 : vector<2x8x1xf32> to vector<2x8x8xf32>
    %55 = arith.subf %51, %54 : vector<2x8x8xf32>
    %56 = math.exp %55 : vector<2x8x8xf32>
    %cst_19 = arith.constant dense<0.000000e+00> : vector<2x8xf32>
    %57 = vector.multi_reduction <add>, %56, %cst_19 [2] : vector<2x8x8xf32> to vector<2x8xf32>
    %58 = vector.shape_cast %57 : vector<2x8xf32> to vector<2x8x1xf32>
    %59 = tpu.reciprocal %58 {approx = true} : vector<2x8x1xf32> -> vector<2x8x1xf32>
    %60 = vector.broadcast %59 : vector<2x8x1xf32> to vector<2x8x8xf32>
    %61 = arith.mulf %56, %60 : vector<2x8x8xf32>
    %62 = arith.truncf %61 : vector<2x8x8xf32> to vector<2x8x8xbf16>
    "tpu.trace_start"() <{level = 10 : i32, message = "bqk,bkd->bqd"}> : () -> ()
    %cst_20 = arith.constant dense<0.000000e+00> : vector<2x8x8xf32>
    %63 = tpu.matmul %62, %48, %cst_20 {dimension_numbers = #tpu.dot_dimension_numbers<[2], [1], [1], [2], [0, 0, 0, 1, 1, 2], [0], [0]>} : vector<2x8x8xbf16>, vector<2x8x8xbf16>, vector<2x8x8xf32> -> vector<2x8x8xf32>
    "tpu.trace_stop"() : () -> ()
    %64 = vector.shape_cast %63 : vector<2x8x8xf32> to vector<16x8xf32>
    %65 = arith.truncf %64 : vector<16x8xf32> to vector<16x8xbf16>
    %c0_21 = arith.constant 0 : index
    %c8 = arith.constant 8 : index
    %66 = vector.load %arg17[%c0_21, %c8] : memref<16x32xbf16, #tpu.memory_space<vmem>>, vector<16x8xbf16>
    tpu.vector_store %arg17[%c0_21, %c8], %65 {strides = array<i32>} : memref<16x32xbf16, #tpu.memory_space<vmem>>, vector<16x8xbf16>,
    %67 = vector.extract_strided_slice %14 {offsets = [0, 0, 16], sizes = [2, 8, 8], strides = [1, 1, 1]} : vector<2x8x32xf32> to vector<2x8x8xf32>
    %68 = arith.truncf %67 : vector<2x8x8xf32> to vector<2x8x8xbf16>
    %69 = vector.extract_strided_slice %16 {offsets = [0, 0, 16], sizes = [2, 8, 8], strides = [1, 1, 1]} : vector<2x8x32xf32> to vector<2x8x8xf32>
    %70 = arith.truncf %69 : vector<2x8x8xf32> to vector<2x8x8xbf16>
    %71 = vector.extract_strided_slice %18 {offsets = [0, 0, 16], sizes = [2, 8, 8], strides = [1, 1, 1]} : vector<2x8x32xf32> to vector<2x8x8xf32>
    %72 = arith.truncf %71 : vector<2x8x8xf32> to vector<2x8x8xbf16>
    "tpu.trace_start"() <{level = 10 : i32, message = "bqd,bkd->bqk"}> : () -> ()
    %cst_22 = arith.constant dense<0.000000e+00> : vector<2x8x8xf32>
    %73 = tpu.matmul %68, %70, %cst_22 {dimension_numbers = #tpu.dot_dimension_numbers<[2], [2], [1], [1], [0, 0, 0, 1, 1, 1], [0], [0]>} : vector<2x8x8xbf16>, vector<2x8x8xbf16>, vector<2x8x8xf32> -> vector<2x8x8xf32>
    "tpu.trace_stop"() : () -> ()
    %74 = vector.broadcast %4 : vector<2x1x8xf32> to vector<2x8x8xf32>
    %75 = arith.addf %73, %74 : vector<2x8x8xf32>
    %cst_23 = arith.constant dense<0xFF800000> : vector<2x8xf32>
    %76 = vector.multi_reduction <maximumf>, %75, %cst_23 [2] : vector<2x8x8xf32> to vector<2x8xf32>
    %77 = vector.shape_cast %76 : vector<2x8xf32> to vector<2x8x1xf32>
    %78 = vector.broadcast %77 : vector<2x8x1xf32> to vector<2x8x8xf32>
    %79 = arith.subf %75, %78 : vector<2x8x8xf32>
    %80 = math.exp %79 : vector<2x8x8xf32>
    %cst_24 = arith.constant dense<0.000000e+00> : vector<2x8xf32>
    %81 = vector.multi_reduction <add>, %80, %cst_24 [2] : vector<2x8x8xf32> to vector<2x8xf32>
    %82 = vector.shape_cast %81 : vector<2x8xf32> to vector<2x8x1xf32>
    %83 = tpu.reciprocal %82 {approx = true} : vector<2x8x1xf32> -> vector<2x8x1xf32>
    %84 = vector.broadcast %83 : vector<2x8x1xf32> to vector<2x8x8xf32>
    %85 = arith.mulf %80, %84 : vector<2x8x8xf32>
    %86 = arith.truncf %85 : vector<2x8x8xf32> to vector<2x8x8xbf16>
    "tpu.trace_start"() <{level = 10 : i32, message = "bqk,bkd->bqd"}> : () -> ()
    %cst_25 = arith.constant dense<0.000000e+00> : vector<2x8x8xf32>
    %87 = tpu.matmul %86, %72, %cst_25 {dimension_numbers = #tpu.dot_dimension_numbers<[2], [1], [1], [2], [0, 0, 0, 1, 1, 2], [0], [0]>} : vector<2x8x8xbf16>, vector<2x8x8xbf16>, vector<2x8x8xf32> -> vector<2x8x8xf32>
    "tpu.trace_stop"() : () -> ()
    %88 = vector.shape_cast %87 : vector<2x8x8xf32> to vector<16x8xf32>
    %89 = arith.truncf %88 : vector<16x8xf32> to vector<16x8xbf16>
    %c0_26 = arith.constant 0 : index
    %c16 = arith.constant 16 : index
    %90 = vector.load %arg17[%c0_26, %c16] : memref<16x32xbf16, #tpu.memory_space<vmem>>, vector<16x8xbf16>
    tpu.vector_store %arg17[%c0_26, %c16], %89 {strides = array<i32>} : memref<16x32xbf16, #tpu.memory_space<vmem>>, vector<16x8xbf16>,
    %91 = vector.extract_strided_slice %14 {offsets = [0, 0, 24], sizes = [2, 8, 8], strides = [1, 1, 1]} : vector<2x8x32xf32> to vector<2x8x8xf32>
    %92 = arith.truncf %91 : vector<2x8x8xf32> to vector<2x8x8xbf16>
    %93 = vector.extract_strided_slice %16 {offsets = [0, 0, 24], sizes = [2, 8, 8], strides = [1, 1, 1]} : vector<2x8x32xf32> to vector<2x8x8xf32>
    %94 = arith.truncf %93 : vector<2x8x8xf32> to vector<2x8x8xbf16>
    %95 = vector.extract_strided_slice %18 {offsets = [0, 0, 24], sizes = [2, 8, 8], strides = [1, 1, 1]} : vector<2x8x32xf32> to vector<2x8x8xf32>
    %96 = arith.truncf %95 : vector<2x8x8xf32> to vector<2x8x8xbf16>
    "tpu.trace_start"() <{level = 10 : i32, message = "bqd,bkd->bqk"}> : () -> ()
    %cst_27 = arith.constant dense<0.000000e+00> : vector<2x8x8xf32>
    %97 = tpu.matmul %92, %94, %cst_27 {dimension_numbers = #tpu.dot_dimension_numbers<[2], [2], [1], [1], [0, 0, 0, 1, 1, 1], [0], [0]>} : vector<2x8x8xbf16>, vector<2x8x8xbf16>, vector<2x8x8xf32> -> vector<2x8x8xf32>
    "tpu.trace_stop"() : () -> ()
    %98 = vector.broadcast %4 : vector<2x1x8xf32> to vector<2x8x8xf32>
    %99 = arith.addf %97, %98 : vector<2x8x8xf32>
    %cst_28 = arith.constant dense<0xFF800000> : vector<2x8xf32>
    %100 = vector.multi_reduction <maximumf>, %99, %cst_28 [2] : vector<2x8x8xf32> to vector<2x8xf32>
    %101 = vector.shape_cast %100 : vector<2x8xf32> to vector<2x8x1xf32>
    %102 = vector.broadcast %101 : vector<2x8x1xf32> to vector<2x8x8xf32>
    %103 = arith.subf %99, %102 : vector<2x8x8xf32>
    %104 = math.exp %103 : vector<2x8x8xf32>
    %cst_29 = arith.constant dense<0.000000e+00> : vector<2x8xf32>
    %105 = vector.multi_reduction <add>, %104, %cst_29 [2] : vector<2x8x8xf32> to vector<2x8xf32>
    %106 = vector.shape_cast %105 : vector<2x8xf32> to vector<2x8x1xf32>
    %107 = tpu.reciprocal %106 {approx = true} : vector<2x8x1xf32> -> vector<2x8x1xf32>
    %108 = vector.broadcast %107 : vector<2x8x1xf32> to vector<2x8x8xf32>
    %109 = arith.mulf %104, %108 : vector<2x8x8xf32>
    %110 = arith.truncf %109 : vector<2x8x8xf32> to vector<2x8x8xbf16>
    "tpu.trace_start"() <{level = 10 : i32, message = "bqk,bkd->bqd"}> : () -> ()
    %cst_30 = arith.constant dense<0.000000e+00> : vector<2x8x8xf32>
    %111 = tpu.matmul %110, %96, %cst_30 {dimension_numbers = #tpu.dot_dimension_numbers<[2], [1], [1], [2], [0, 0, 0, 1, 1, 2], [0], [0]>} : vector<2x8x8xbf16>, vector<2x8x8xbf16>, vector<2x8x8xf32> -> vector<2x8x8xf32>
    "tpu.trace_stop"() : () -> ()
    %112 = vector.shape_cast %111 : vector<2x8x8xf32> to vector<16x8xf32>
    %113 = arith.truncf %112 : vector<16x8xf32> to vector<16x8xbf16>
    %c0_31 = arith.constant 0 : index
    %c24 = arith.constant 24 : index
    %114 = vector.load %arg17[%c0_31, %c24] : memref<16x32xbf16, #tpu.memory_space<vmem>>, vector<16x8xbf16>
    tpu.vector_store %arg17[%c0_31, %c24], %113 {strides = array<i32>} : memref<16x32xbf16, #tpu.memory_space<vmem>>, vector<16x8xbf16>,
    %c0_32 = arith.constant 0 : index
    %c0_33 = arith.constant 0 : index
    %115 = vector.load %arg17[%c0_32, %c0_33] : memref<16x32xbf16, #tpu.memory_space<vmem>>, vector<16x32xbf16>
    %c0_34 = arith.constant 0 : index
    %c0_35 = arith.constant 0 : index
    %c0_36 = arith.constant 0 : index
    %116 = vector.load %arg6[%c0_34, %c0_35, %c0_36] : memref<1x32x32xbf16, #tpu.memory_space<vmem>>, vector<1x32x32xbf16>
    %117 = vector.shape_cast %116 : vector<1x32x32xbf16> to vector<32x32xbf16>
    %cst_37 = arith.constant dense<0.000000e+00> : vector<16x32xf32>
    %118 = tpu.matmul %115, %117, %cst_37 {dimension_numbers = #tpu.dot_dimension_numbers<[1], [0], [0], [1], [0, 0, 1, 1], [], []>} : vector<16x32xbf16>, vector<32x32xbf16>, vector<16x32xf32> -> vector<16x32xf32>
    %c0_38 = arith.constant 0 : index
    %c0_39 = arith.constant 0 : index
    %c0_40 = arith.constant 0 : index
    %119 = vector.load %arg7[%c0_38, %c0_39, %c0_40] : memref<1x1x32xf32, #tpu.memory_space<vmem>>, vector<1x1x32xf32>
    %120 = vector.shape_cast %119 : vector<1x1x32xf32> to vector<1x32xf32>
    %121 = vector.broadcast %120 : vector<1x32xf32> to vector<16x32xf32>
    %122 = arith.addf %118, %121 : vector<16x32xf32>
    %123 = arith.addf %3, %122 : vector<16x32xf32>
    %c0_41 = arith.constant 0 : index
    %c0_42 = arith.constant 0 : index
    %c0_43 = arith.constant 0 : index
    %124 = vector.load %arg8[%c0_41, %c0_42, %c0_43] : memref<1x1x32xf32, #tpu.memory_space<vmem>>, vector<1x1x32xf32>
    %125 = vector.shape_cast %124 : vector<1x1x32xf32> to vector<1x32xf32>
    %c0_44 = arith.constant 0 : index
    %c0_45 = arith.constant 0 : index
    %c0_46 = arith.constant 0 : index
    %126 = vector.load %arg9[%c0_44, %c0_45, %c0_46] : memref<1x1x32xf32, #tpu.memory_space<vmem>>, vector<1x1x32xf32>
    %127 = vector.shape_cast %126 : vector<1x1x32xf32> to vector<1x32xf32>
    %cst_47 = arith.constant dense<0.000000e+00> : vector<16xf32>
    %128 = vector.multi_reduction <add>, %123, %cst_47 [1] : vector<16x32xf32> to vector<16xf32>
    %129 = vector.shape_cast %128 : vector<16xf32> to vector<16x1xf32>
    %cst_48 = arith.constant 3.200000e+01 : f32
    %130 = vector.broadcast %cst_48 : f32 to vector<16x1xf32>
    %131 = arith.divf %129, %130 : vector<16x1xf32>
    %132 = vector.broadcast %131 : vector<16x1xf32> to vector<16x32xf32>
    %133 = arith.subf %123, %132 : vector<16x32xf32>
    %134 = arith.mulf %133, %133 : vector<16x32xf32>
    %cst_49 = arith.constant dense<0.000000e+00> : vector<16xf32>
    %135 = vector.multi_reduction <add>, %134, %cst_49 [1] : vector<16x32xf32> to vector<16xf32>
    %136 = vector.shape_cast %135 : vector<16xf32> to vector<16x1xf32>
    %cst_50 = arith.constant 3.200000e+01 : f32
    %137 = vector.broadcast %cst_50 : f32 to vector<16x1xf32>
    %138 = arith.divf %136, %137 : vector<16x1xf32>
    %139 = vector.broadcast %131 : vector<16x1xf32> to vector<16x32xf32>
    %140 = arith.subf %123, %139 : vector<16x32xf32>
    %cst_51 = arith.constant 9.99999974E-6 : f32
    %141 = vector.broadcast %cst_51 : f32 to vector<16x1xf32>
    %142 = arith.addf %138, %141 : vector<16x1xf32>
    %143 = math.rsqrt %142 : vector<16x1xf32>
    %144 = vector.broadcast %143 : vector<16x1xf32> to vector<16x32xf32>
    %145 = arith.mulf %140, %144 : vector<16x32xf32>
    %146 = vector.broadcast %125 : vector<1x32xf32> to vector<16x32xf32>
    %147 = arith.mulf %145, %146 : vector<16x32xf32>
    %148 = vector.broadcast %127 : vector<1x32xf32> to vector<16x32xf32>
    %149 = arith.addf %147, %148 : vector<16x32xf32>
    %150 = arith.truncf %149 : vector<16x32xf32> to vector<16x32xbf16>
    %c0_52 = arith.constant 0 : index
    %c0_53 = arith.constant 0 : index
    %c0_54 = arith.constant 0 : index
    %151 = vector.load %arg10[%c0_52, %c0_53, %c0_54] : memref<1x32x64xbf16, #tpu.memory_space<vmem>>, vector<1x32x64xbf16>
    %152 = vector.shape_cast %151 : vector<1x32x64xbf16> to vector<32x64xbf16>
    %cst_55 = arith.constant dense<0.000000e+00> : vector<16x64xf32>
    %153 = tpu.matmul %150, %152, %cst_55 {dimension_numbers = #tpu.dot_dimension_numbers<[1], [0], [0], [1], [0, 0, 1, 1], [], []>} : vector<16x32xbf16>, vector<32x64xbf16>, vector<16x64xf32> -> vector<16x64xf32>
    %c0_56 = arith.constant 0 : index
    %c0_57 = arith.constant 0 : index
    %c0_58 = arith.constant 0 : index
    %154 = vector.load %arg11[%c0_56, %c0_57, %c0_58] : memref<1x1x64xf32, #tpu.memory_space<vmem>>, vector<1x1x64xf32>
    %155 = vector.shape_cast %154 : vector<1x1x64xf32> to vector<1x64xf32>
    %156 = vector.broadcast %155 : vector<1x64xf32> to vector<16x64xf32>
    %157 = arith.addf %153, %156 : vector<16x64xf32>
    %cst_59 = arith.constant 0.000000e+00 : f32
    %158 = vector.broadcast %cst_59 : f32 to vector<16x64xf32>
    %159 = arith.maximumf %157, %158 : vector<16x64xf32>
    %160 = arith.truncf %159 : vector<16x64xf32> to vector<16x64xbf16>
    %c0_60 = arith.constant 0 : index
    %c0_61 = arith.constant 0 : index
    %c0_62 = arith.constant 0 : index
    %161 = vector.load %arg12[%c0_60, %c0_61, %c0_62] : memref<1x64x32xbf16, #tpu.memory_space<vmem>>, vector<1x64x32xbf16>
    %162 = vector.shape_cast %161 : vector<1x64x32xbf16> to vector<64x32xbf16>
    %cst_63 = arith.constant dense<0.000000e+00> : vector<16x32xf32>
    %163 = tpu.matmul %160, %162, %cst_63 {dimension_numbers = #tpu.dot_dimension_numbers<[1], [0], [0], [1], [0, 0, 1, 1], [], []>} : vector<16x64xbf16>, vector<64x32xbf16>, vector<16x32xf32> -> vector<16x32xf32>
    %c0_64 = arith.constant 0 : index
    %c0_65 = arith.constant 0 : index
    %c0_66 = arith.constant 0 : index
    %164 = vector.load %arg13[%c0_64, %c0_65, %c0_66] : memref<1x1x32xf32, #tpu.memory_space<vmem>>, vector<1x1x32xf32>
    %165 = vector.shape_cast %164 : vector<1x1x32xf32> to vector<1x32xf32>
    %166 = vector.broadcast %165 : vector<1x32xf32> to vector<16x32xf32>
    %167 = arith.addf %163, %166 : vector<16x32xf32>
    %168 = arith.addf %149, %167 : vector<16x32xf32>
    %c0_67 = arith.constant 0 : index
    %c0_68 = arith.constant 0 : index
    %c0_69 = arith.constant 0 : index
    %169 = vector.load %arg14[%c0_67, %c0_68, %c0_69] : memref<1x1x32xf32, #tpu.memory_space<vmem>>, vector<1x1x32xf32>
    %170 = vector.shape_cast %169 : vector<1x1x32xf32> to vector<1x32xf32>
    %c0_70 = arith.constant 0 : index
    %c0_71 = arith.constant 0 : index
    %c0_72 = arith.constant 0 : index
    %171 = vector.load %arg15[%c0_70, %c0_71, %c0_72] : memref<1x1x32xf32, #tpu.memory_space<vmem>>, vector<1x1x32xf32>
    %172 = vector.shape_cast %171 : vector<1x1x32xf32> to vector<1x32xf32>
    %cst_73 = arith.constant dense<0.000000e+00> : vector<16xf32>
    %173 = vector.multi_reduction <add>, %168, %cst_73 [1] : vector<16x32xf32> to vector<16xf32>
    %174 = vector.shape_cast %173 : vector<16xf32> to vector<16x1xf32>
    %cst_74 = arith.constant 3.200000e+01 : f32
    %175 = vector.broadcast %cst_74 : f32 to vector<16x1xf32>
    %176 = arith.divf %174, %175 : vector<16x1xf32>
    %177 = vector.broadcast %176 : vector<16x1xf32> to vector<16x32xf32>
    %178 = arith.subf %168, %177 : vector<16x32xf32>
    %179 = arith.mulf %178, %178 : vector<16x32xf32>
    %cst_75 = arith.constant dense<0.000000e+00> : vector<16xf32>
    %180 = vector.multi_reduction <add>, %179, %cst_75 [1] : vector<16x32xf32> to vector<16xf32>
    %181 = vector.shape_cast %180 : vector<16xf32> to vector<16x1xf32>
    %cst_76 = arith.constant 3.200000e+01 : f32
    %182 = vector.broadcast %cst_76 : f32 to vector<16x1xf32>
    %183 = arith.divf %181, %182 : vector<16x1xf32>
    %184 = vector.broadcast %176 : vector<16x1xf32> to vector<16x32xf32>
    %185 = arith.subf %168, %184 : vector<16x32xf32>
    %cst_77 = arith.constant 9.99999974E-6 : f32
    %186 = vector.broadcast %cst_77 : f32 to vector<16x1xf32>
    %187 = arith.addf %183, %186 : vector<16x1xf32>
    %188 = math.rsqrt %187 : vector<16x1xf32>
    %189 = vector.broadcast %188 : vector<16x1xf32> to vector<16x32xf32>
    %190 = arith.mulf %185, %189 : vector<16x32xf32>
    %191 = vector.broadcast %170 : vector<1x32xf32> to vector<16x32xf32>
    %192 = arith.mulf %190, %191 : vector<16x32xf32>
    %193 = vector.broadcast %172 : vector<1x32xf32> to vector<16x32xf32>
    %194 = arith.addf %192, %193 : vector<16x32xf32>
    %c0_78 = arith.constant 0 : index
    %c0_79 = arith.constant 0 : index
    %195 = vector.load %arg16[%c0_78, %c0_79] : memref<16x32xf32, #tpu.memory_space<vmem>>, vector<16x32xf32>
    tpu.vector_store %arg16[%c0_78, %c0_79], %194 {strides = array<i32>} : memref<16x32xf32, #tpu.memory_space<vmem>>, vector<16x32xf32>,
    return
  }
  func.func @transform_0(%arg0: i32, %arg1: i32) -> (i32, i32) {
    %c0_i32 = arith.constant 0 : i32
    %c0_i32_0 = arith.constant 0 : i32
    return %arg0, %c0_i32 : i32, i32
  }
  func.func @transform_1(%arg0: i32, %arg1: i32) -> (i32, i32, i32) {
    %c0_i32 = arith.constant 0 : i32
    %c0_i32_0 = arith.constant 0 : i32
    %c0_i32_1 = arith.constant 0 : i32
    return %arg0, %c0_i32, %c0_i32_0 : i32, i32, i32
  }
  func.func @transform_2(%arg0: i32, %arg1: i32) -> (i32, i32, i32) {
    %c0_i32 = arith.constant 0 : i32
    %c0_i32_0 = arith.constant 0 : i32
    %c0_i32_1 = arith.constant 0 : i32
    return %arg1, %c0_i32, %c0_i32_0 : i32, i32, i32
  }
  func.func @transform_3(%arg0: i32, %arg1: i32) -> (i32, i32, i32) {
    %c0_i32 = arith.constant 0 : i32
    %c0_i32_0 = arith.constant 0 : i32
    %c0_i32_1 = arith.constant 0 : i32
    return %arg1, %c0_i32, %c0_i32_0 : i32, i32, i32
  }
  func.func @transform_4(%arg0: i32, %arg1: i32) -> (i32, i32, i32) {
    %c0_i32 = arith.constant 0 : i32
    %c0_i32_0 = arith.constant 0 : i32
    %c0_i32_1 = arith.constant 0 : i32
    return %arg1, %c0_i32, %c0_i32_0 : i32, i32, i32
  }
  func.func @transform_5(%arg0: i32, %arg1: i32) -> (i32, i32, i32) {
    %c0_i32 = arith.constant 0 : i32
    %c0_i32_0 = arith.constant 0 : i32
    %c0_i32_1 = arith.constant 0 : i32
    return %arg1, %c0_i32, %c0_i32_0 : i32, i32, i32
  }
  func.func @transform_6(%arg0: i32, %arg1: i32) -> (i32, i32, i32) {
    %c0_i32 = arith.constant 0 : i32
    %c0_i32_0 = arith.constant 0 : i32
    %c0_i32_1 = arith.constant 0 : i32
    return %arg1, %c0_i32, %c0_i32_0 : i32, i32, i32
  }
  func.func @transform_7(%arg0: i32, %arg1: i32) -> (i32, i32, i32) {
    %c0_i32 = arith.constant 0 : i32
    %c0_i32_0 = arith.constant 0 : i32
    %c0_i32_1 = arith.constant 0 : i32
    return %arg1, %c0_i32, %c0_i32_0 : i32, i32, i32
  }
  func.func @transform_8(%arg0: i32, %arg1: i32) -> (i32, i32, i32) {
    %c0_i32 = arith.constant 0 : i32
    %c0_i32_0 = arith.constant 0 : i32
    %c0_i32_1 = arith.constant 0 : i32
    return %arg1, %c0_i32, %c0_i32_0 : i32, i32, i32
  }
  func.func @transform_9(%arg0: i32, %arg1: i32) -> (i32, i32, i32) {
    %c0_i32 = arith.constant 0 : i32
    %c0_i32_0 = arith.constant 0 : i32
    %c0_i32_1 = arith.constant 0 : i32
    return %arg1, %c0_i32, %c0_i32_0 : i32, i32, i32
  }
  func.func @transform_10(%arg0: i32, %arg1: i32) -> (i32, i32, i32) {
    %c0_i32 = arith.constant 0 : i32
    %c0_i32_0 = arith.constant 0 : i32
    %c0_i32_1 = arith.constant 0 : i32
    return %arg1, %c0_i32, %c0_i32_0 : i32, i32, i32
  }
  func.func @transform_11(%arg0: i32, %arg1: i32) -> (i32, i32, i32) {
    %c0_i32 = arith.constant 0 : i32
    %c0_i32_0 = arith.constant 0 : i32
    %c0_i32_1 = arith.constant 0 : i32
    return %arg1, %c0_i32, %c0_i32_0 : i32, i32, i32
  }
  func.func @transform_12(%arg0: i32, %arg1: i32) -> (i32, i32, i32) {
    %c0_i32 = arith.constant 0 : i32
    %c0_i32_0 = arith.constant 0 : i32
    %c0_i32_1 = arith.constant 0 : i32
    return %arg1, %c0_i32, %c0_i32_0 : i32, i32, i32
  }
  func.func @transform_13(%arg0: i32, %arg1: i32) -> (i32, i32, i32) {
    %c0_i32 = arith.constant 0 : i32
    %c0_i32_0 = arith.constant 0 : i32
    %c0_i32_1 = arith.constant 0 : i32
    return %arg1, %c0_i32, %c0_i32_0 : i32, i32, i32
  }
  func.func @transform_14(%arg0: i32, %arg1: i32) -> (i32, i32) {
    %c0_i32 = arith.constant 0 : i32
    %c0_i32_0 = arith.constant 0 : i32
    return %arg0, %c0_i32 : i32, i32
  }
}

</mosaic_0001>

<llo_original>
// kernel: tpu_custom_call.1
$region0: #{tpu_custom_call.1}
  #allocation0 [shape = 'u32[]', space=smem, size = 0x4, offset = 0x4, fixed_abs, tag = 'smem constant byte address 0x4 - core index']
  #allocation1 [shape = 'u32[144,128]{1,0:T(1,128)}', space=vmem, size = 0x12000, scoped, tag = 'internal scratch']
  #allocation2 [shape = 'bf16[16,32]{1,0:T(16,128)(2,1)}', space=vmem, size = 0x1000, scoped, tag = 'scratch operand']
  %s0 = inlined_call_operand.hbm [shape: f32[16,32], index: 0, kind: input, shape index: {}]
  %s1 = inlined_call_operand.hbm [shape: f32[2,1,8], index: 1, kind: input, shape index: {}]
  %s2 = inlined_call_operand.hbm [shape: bf16[2,32,96], index: 2, kind: input, shape index: {}]
  %s3 = inlined_call_operand.hbm [shape: f32[2,1,96], index: 3, kind: input, shape index: {}]
  %s4 = inlined_call_operand.hbm [shape: bf16[2,32,32], index: 4, kind: input, shape index: {}]
  %s5 = inlined_call_operand.hbm [shape: f32[2,1,32], index: 5, kind: input, shape index: {}]
  %s6 = inlined_call_operand.hbm [shape: f32[2,1,32], index: 6, kind: input, shape index: {}]
  %s7 = inlined_call_operand.hbm [shape: f32[2,1,32], index: 7, kind: input, shape index: {}]
  %s8 = inlined_call_operand.hbm [shape: bf16[2,32,64], index: 8, kind: input, shape index: {}]
  %s9 = inlined_call_operand.hbm [shape: f32[2,1,64], index: 9, kind: input, shape index: {}]
  %s10 = inlined_call_operand.hbm [shape: bf16[2,64,32], index: 10, kind: input, shape index: {}]
  %s11 = inlined_call_operand.hbm [shape: f32[2,1,32], index: 11, kind: input, shape index: {}]
  %s12 = inlined_call_operand.hbm [shape: f32[2,1,32], index: 12, kind: input, shape index: {}]
  %s13 = inlined_call_operand.hbm [shape: f32[2,1,32], index: 13, kind: input, shape index: {}]
  %s14 = inlined_call_operand.hbm [shape: f32[16,32], index: 14, kind: output, shape index: {}]
  %s15 = sld [smem:[#allocation0]]
  $region149: #{tpu_custom_call.1} parent=0
    _
  %s17 = ssub.s32 1, %s15
  %s18 = scalar_select 0, %s17, %s15
  $region1: #{tpu_custom_call.1} parent=0
    #allocation3 [shape = 'u8[8192]{0}', space=vmem, size = 0x2000, scoped, tag = 'input window, operand 0, single buffered']
    #allocation4 [shape = 's32[2]{0}', space=sflag, size = 0x8, scoped, tag = 'scoped memory for tpu_custom_call.1']
    #allocation5 [shape = 's32[2]{0}', space=sflag, size = 0x8, scoped, tag = 'scoped memory for tpu_custom_call.1']
    #allocation6 [shape = 'u8[1024]{0}', space=vmem, size = 0x400, scoped, tag = 'input window, operand 1, single buffered']
    #allocation7 [shape = 's32[1]{0}', space=sflag, size = 0x4, scoped, tag = 'scoped memory for tpu_custom_call.1']
    #allocation8 [shape = 'u8[16384]{0}', space=vmem, size = 0x4000, scoped, tag = 'input window, operand 2']
    #allocation9 [shape = 'u8[1024]{0}', space=vmem, size = 0x400, scoped, tag = 'input window, operand 3']
    #allocation10 [shape = 'u8[16384]{0}', space=vmem, size = 0x4000, scoped, tag = 'input window, operand 4']
    #allocation11 [shape = 'u8[1024]{0}', space=vmem, size = 0x400, scoped, tag = 'input window, operand 5']
    #allocation12 [shape = 'u8[1024]{0}', space=vmem, size = 0x400, scoped, tag = 'input window, operand 6']
    #allocation13 [shape = 'u8[1024]{0}', space=vmem, size = 0x400, scoped, tag = 'input window, operand 7']
    #allocation14 [shape = 'u8[16384]{0}', space=vmem, size = 0x4000, scoped, tag = 'input window, operand 8']
    #allocation15 [shape = 'u8[1024]{0}', space=vmem, size = 0x400, scoped, tag = 'input window, operand 9']
    #allocation16 [shape = 'u8[32768]{0}', space=vmem, size = 0x8000, scoped, tag = 'input window, operand 10']
    #allocation17 [shape = 'u8[1024]{0}', space=vmem, size = 0x400, scoped, tag = 'input window, operand 11']
    #allocation18 [shape = 'u8[1024]{0}', space=vmem, size = 0x400, scoped, tag = 'input window, operand 12']
    #allocation19 [shape = 'u8[1024]{0}', space=vmem, size = 0x400, scoped, tag = 'input window, operand 13']
    #allocation20 [shape = 'u8[8192]{0}', space=vmem, size = 0x2000, scoped, tag = 'output window, operand 0, single buffered']
    %19 = vsyncpa [#allocation4], 0
    %20 = vsyncpa [#allocation7], 0
    %21 = vsyncpa [#allocation5], 0
    loop: start=0, step=1, limit=4
    $region2: #{tpu_custom_call.1} parent=1 // loop_pre_header
      _
    $region3: #{tpu_custom_call.1} parent=1 // loop_header
      %s23 = sphi 0, %s27
      %p24 = scmp.ge.s32.totalorder %s23, 4
      %s30 = sphi 0, %s42
      %s31 = sphi 0, %s38
      %s32 = sphi 0, %s30
      %s33 = sphi 0, %s31
      %s34 = sphi 0, %s32
      %s35 = sphi 0, %s33
      %s45 = sphi 0, %s47
      %s48 = sphi 0, %s45
      %s49 = sphi 0, %s48
      %s65 = sphi 0, %s49
      %s71 = sphi 0, %s73
      %s74 = sphi 0, %s71
      %s75 = sphi 0, %s74
      %s91 = sphi 0, %s75
      %s97 = sphi 0, %s99
      %s100 = sphi 0, %s97
      %s101 = sphi 0, %s100
      %s117 = sphi 0, %s101
      %s123 = sphi 0, %s125
      %s126 = sphi 0, %s123
      %s127 = sphi 0, %s126
      %s143 = sphi 0, %s127
      %s149 = sphi 0, %s151
      %s152 = sphi 0, %s149
      %s153 = sphi 0, %s152
      %s169 = sphi 0, %s153
      %s175 = sphi 0, %s177
      %s178 = sphi 0, %s175
      %s179 = sphi 0, %s178
      %s195 = sphi 0, %s179
      %s201 = sphi 0, %s203
      %s204 = sphi 0, %s201
      %s205 = sphi 0, %s204
      %s221 = sphi 0, %s205
      %s227 = sphi 0, %s229
      %s230 = sphi 0, %s227
      %s231 = sphi 0, %s230
      %s247 = sphi 0, %s231
      %s253 = sphi 0, %s255
      %s256 = sphi 0, %s253
      %s257 = sphi 0, %s256
      %s273 = sphi 0, %s257
      %s279 = sphi 0, %s281
      %s282 = sphi 0, %s279
      %s283 = sphi 0, %s282
      %s299 = sphi 0, %s283
      %s305 = sphi 0, %s307
      %s308 = sphi 0, %s305
      %s309 = sphi 0, %s308
      %s325 = sphi 0, %s309
      %s331 = sphi 0, %s333
      %s334 = sphi 0, %s331
      %s335 = sphi 0, %s334
      %s351 = sphi 0, %s335
      %s357 = sphi 0, %s359
      %s360 = sphi 0, %s357
      %s361 = sphi 0, %s360
      %s377 = sphi 0, %s361
      %s383 = sphi 0, %s385
      %s386 = sphi 0, %s383
      %s387 = sphi 0, %s386
      %s403 = sphi 0, %s387
      %s409 = sphi 0, %s411
      %s412 = sphi 0, %s409
      %s413 = sphi 0, %s412
      %s429 = sphi 0, %s413
    $region4: #{tpu_custom_call.1} parent=1 // loop_header_branch
      %26 = sbr.rel (%p24) target = $region8
    $region5: #{tpu_custom_call.1} parent=1 // loop_body
      %s28 = ssub.s32 %s23, 1
      %s29 = ssub.s32 %s23, 2
      %s36 = sadd.s32 1, %s31
      %p37 = scmp.ge.s32.totalorder %s36, 2
      %s38 = scalar_select %p37, 0, %s36
      %s39 = sadd.s32 1, %s30
      %s40 = scalar_select %p37, %s39, %s30
      %p41 = scmp.ge.s32.totalorder %s40, 1
      %s42 = scalar_select %p41, 0, %s40
      %s43 = ssub.s32 %s30, %s42
      %p44 = scmp.eq.s32.totalorder %s43, 0
      %s46 = sadd.s32 %s45, 1
      %s47 = scalar_select %p44, %s45, %s46
      %p50 = pneg %p44
      %p51 = scmp.eq.s32.totalorder %s23, 1
      %p52 = por %p50, %p51
      %p53 = scmp.ne.s32.totalorder %s45, %s48
      %p54 = scmp.eq.s32.totalorder %s23, 0
      %p55 = por %p53, %p54
      %p56 = scmp.ne.s32.totalorder %s45, %s48
      %p57 = scmp.eq.s32.totalorder %s28, 1
      %p58 = por %p56, %p57
      %p59 = scmp.ne.s32.totalorder %s48, %s49
      %p60 = scmp.eq.s32.totalorder %s28, 0
      %p61 = por %p59, %p60
      %p62 = scmp.ne.s32.totalorder %s48, %s49
      %p63 = scmp.eq.s32.totalorder %s29, 1
      %p64 = por %p62, %p63
      %p66 = scmp.ne.s32.totalorder %s49, %s65
      %p67 = scmp.eq.s32.totalorder %s29, 0
      %p68 = por %p66, %p67
      %s69 = ssub.s32 %s30, %s42
      %p70 = scmp.eq.s32.totalorder %s69, 0
      %s72 = sadd.s32 %s71, 1
      %s73 = scalar_select %p70, %s71, %s72
      %p76 = pneg %p70
      %p77 = scmp.eq.s32.totalorder %s23, 1
      %p78 = por %p76, %p77
      %p79 = scmp.ne.s32.totalorder %s71, %s74
      %p80 = scmp.eq.s32.totalorder %s23, 0
      %p81 = por %p79, %p80
      %p82 = scmp.ne.s32.totalorder %s71, %s74
      %p83 = scmp.eq.s32.totalorder %s28, 1
      %p84 = por %p82, %p83
      %p85 = scmp.ne.s32.totalorder %s74, %s75
      %p86 = scmp.eq.s32.totalorder %s28, 0
      %p87 = por %p85, %p86
      %p88 = scmp.ne.s32.totalorder %s74, %s75
      %p89 = scmp.eq.s32.totalorder %s29, 1
      %p90 = por %p88, %p89
      %p92 = scmp.ne.s32.totalorder %s75, %s91
      %p93 = scmp.eq.s32.totalorder %s29, 0
      %p94 = por %p92, %p93
      %s95 = ssub.s32 %s31, %s38
      %p96 = scmp.eq.s32.totalorder %s95, 0
      %s98 = sadd.s32 %s97, 1
      %s99 = scalar_select %p96, %s97, %s98
      %p102 = pneg %p96
      %p103 = scmp.eq.s32.totalorder %s23, 1
      %p104 = por %p102, %p103
      %p105 = scmp.ne.s32.totalorder %s97, %s100
      %p106 = scmp.eq.s32.totalorder %s23, 0
      %p107 = por %p105, %p106
      %p108 = scmp.ne.s32.totalorder %s97, %s100
      %p109 = scmp.eq.s32.totalorder %s28, 1
      %p110 = por %p108, %p109
      %p111 = scmp.ne.s32.totalorder %s100, %s101
      %p112 = scmp.eq.s32.totalorder %s28, 0
      %p113 = por %p111, %p112
      %p114 = scmp.ne.s32.totalorder %s100, %s101
      %p115 = scmp.eq.s32.totalorder %s29, 1
      %p116 = por %p114, %p115
      %p118 = scmp.ne.s32.totalorder %s101, %s117
      %p119 = scmp.eq.s32.totalorder %s29, 0
      %p120 = por %p118, %p119
      %s121 = ssub.s32 %s31, %s38
      %p122 = scmp.eq.s32.totalorder %s121, 0
      %s124 = sadd.s32 %s123, 1
      %s125 = scalar_select %p122, %s123, %s124
      %p128 = pneg %p122
      %p129 = scmp.eq.s32.totalorder %s23, 1
      %p130 = por %p128, %p129
      %p131 = scmp.ne.s32.totalorder %s123, %s126
      %p132 = scmp.eq.s32.totalorder %s23, 0
      %p133 = por %p131, %p132
      %p134 = scmp.ne.s32.totalorder %s123, %s126
      %p135 = scmp.eq.s32.totalorder %s28, 1
      %p136 = por %p134, %p135
      %p137 = scmp.ne.s32.totalorder %s126, %s127
      %p138 = scmp.eq.s32.totalorder %s28, 0
      %p139 = por %p137, %p138
      %p140 = scmp.ne.s32.totalorder %s126, %s127
      %p141 = scmp.eq.s32.totalorder %s29, 1
      %p142 = por %p140, %p141
      %p144 = scmp.ne.s32.totalorder %s127, %s143
      %p145 = scmp.eq.s32.totalorder %s29, 0
      %p146 = por %p144, %p145
      %s147 = ssub.s32 %s31, %s38
      %p148 = scmp.eq.s32.totalorder %s147, 0
      %s150 = sadd.s32 %s149, 1
      %s151 = scalar_select %p148, %s149, %s150
      %p154 = pneg %p148
      %p155 = scmp.eq.s32.totalorder %s23, 1
      %p156 = por %p154, %p155
      %p157 = scmp.ne.s32.totalorder %s149, %s152
      %p158 = scmp.eq.s32.totalorder %s23, 0
      %p159 = por %p157, %p158
      %p160 = scmp.ne.s32.totalorder %s149, %s152
      %p161 = scmp.eq.s32.totalorder %s28, 1
      %p162 = por %p160, %p161
      %p163 = scmp.ne.s32.totalorder %s152, %s153
      %p164 = scmp.eq.s32.totalorder %s28, 0
      %p165 = por %p163, %p164
      %p166 = scmp.ne.s32.totalorder %s152, %s153
      %p167 = scmp.eq.s32.totalorder %s29, 1
      %p168 = por %p166, %p167
      %p170 = scmp.ne.s32.totalorder %s153, %s169
      %p171 = scmp.eq.s32.totalorder %s29, 0
      %p172 = por %p170, %p171
      %s173 = ssub.s32 %s31, %s38
      %p174 = scmp.eq.s32.totalorder %s173, 0
      %s176 = sadd.s32 %s175, 1
      %s177 = scalar_select %p174, %s175, %s176
      %p180 = pneg %p174
      %p181 = scmp.eq.s32.totalorder %s23, 1
      %p182 = por %p180, %p181
      %p183 = scmp.ne.s32.totalorder %s175, %s178
      %p184 = scmp.eq.s32.totalorder %s23, 0
      %p185 = por %p183, %p184
      %p186 = scmp.ne.s32.totalorder %s175, %s178
      %p187 = scmp.eq.s32.totalorder %s28, 1
      %p188 = por %p186, %p187
      %p189 = scmp.ne.s32.totalorder %s178, %s179
      %p190 = scmp.eq.s32.totalorder %s28, 0
      %p191 = por %p189, %p190
      %p192 = scmp.ne.s32.totalorder %s178, %s179
      %p193 = scmp.eq.s32.totalorder %s29, 1
      %p194 = por %p192, %p193
      %p196 = scmp.ne.s32.totalorder %s179, %s195
      %p197 = scmp.eq.s32.totalorder %s29, 0
      %p198 = por %p196, %p197
      %s199 = ssub.s32 %s31, %s38
      %p200 = scmp.eq.s32.totalorder %s199, 0
      %s202 = sadd.s32 %s201, 1
      %s203 = scalar_select %p200, %s201, %s202
      %p206 = pneg %p200
      %p207 = scmp.eq.s32.totalorder %s23, 1
      %p208 = por %p206, %p207
      %p209 = scmp.ne.s32.totalorder %s201, %s204
      %p210 = scmp.eq.s32.totalorder %s23, 0
      %p211 = por %p209, %p210
      %p212 = scmp.ne.s32.totalorder %s201, %s204
      %p213 = scmp.eq.s32.totalorder %s28, 1
      %p214 = por %p212, %p213
      %p215 = scmp.ne.s32.totalorder %s204, %s205
      %p216 = scmp.eq.s32.totalorder %s28, 0
      %p217 = por %p215, %p216
      %p218 = scmp.ne.s32.totalorder %s204, %s205
      %p219 = scmp.eq.s32.totalorder %s29, 1
      %p220 = por %p218, %p219
      %p222 = scmp.ne.s32.totalorder %s205, %s221
      %p223 = scmp.eq.s32.totalorder %s29, 0
      %p224 = por %p222, %p223
      %s225 = ssub.s32 %s31, %s38
      %p226 = scmp.eq.s32.totalorder %s225, 0
      %s228 = sadd.s32 %s227, 1
      %s229 = scalar_select %p226, %s227, %s228
      %p232 = pneg %p226
      %p233 = scmp.eq.s32.totalorder %s23, 1
      %p234 = por %p232, %p233
      %p235 = scmp.ne.s32.totalorder %s227, %s230
      %p236 = scmp.eq.s32.totalorder %s23, 0
      %p237 = por %p235, %p236
      %p238 = scmp.ne.s32.totalorder %s227, %s230
      %p239 = scmp.eq.s32.totalorder %s28, 1
      %p240 = por %p238, %p239
      %p241 = scmp.ne.s32.totalorder %s230, %s231
      %p242 = scmp.eq.s32.totalorder %s28, 0
      %p243 = por %p241, %p242
      %p244 = scmp.ne.s32.totalorder %s230, %s231
      %p245 = scmp.eq.s32.totalorder %s29, 1
      %p246 = por %p244, %p245
      %p248 = scmp.ne.s32.totalorder %s231, %s247
      %p249 = scmp.eq.s32.totalorder %s29, 0
      %p250 = por %p248, %p249
      %s251 = ssub.s32 %s31, %s38
      %p252 = scmp.eq.s32.totalorder %s251, 0
      %s254 = sadd.s32 %s253, 1
      %s255 = scalar_select %p252, %s253, %s254
      %p258 = pneg %p252
      %p259 = scmp.eq.s32.totalorder %s23, 1
      %p260 = por %p258, %p259
      %p261 = scmp.ne.s32.totalorder %s253, %s256
      %p262 = scmp.eq.s32.totalorder %s23, 0
      %p263 = por %p261, %p262
      %p264 = scmp.ne.s32.totalorder %s253, %s256
      %p265 = scmp.eq.s32.totalorder %s28, 1
      %p266 = por %p264, %p265
      %p267 = scmp.ne.s32.totalorder %s256, %s257
      %p268 = scmp.eq.s32.totalorder %s28, 0
      %p269 = por %p267, %p268
      %p270 = scmp.ne.s32.totalorder %s256, %s257
      %p271 = scmp.eq.s32.totalorder %s29, 1
      %p272 = por %p270, %p271
      %p274 = scmp.ne.s32.totalorder %s257, %s273
      %p275 = scmp.eq.s32.totalorder %s29, 0
      %p276 = por %p274, %p275
      %s277 = ssub.s32 %s31, %s38
      %p278 = scmp.eq.s32.totalorder %s277, 0
      %s280 = sadd.s32 %s279, 1
      %s281 = scalar_select %p278, %s279, %s280
      %p284 = pneg %p278
      %p285 = scmp.eq.s32.totalorder %s23, 1
      %p286 = por %p284, %p285
      %p287 = scmp.ne.s32.totalorder %s279, %s282
      %p288 = scmp.eq.s32.totalorder %s23, 0
      %p289 = por %p287, %p288
      %p290 = scmp.ne.s32.totalorder %s279, %s282
      %p291 = scmp.eq.s32.totalorder %s28, 1
      %p292 = por %p290, %p291
      %p293 = scmp.ne.s32.totalorder %s282, %s283
      %p294 = scmp.eq.s32.totalorder %s28, 0
      %p295 = por %p293, %p294
      %p296 = scmp.ne.s32.totalorder %s282, %s283
      %p297 = scmp.eq.s32.totalorder %s29, 1
      %p298 = por %p296, %p297
      %p300 = scmp.ne.s32.totalorder %s283, %s299
      %p301 = scmp.eq.s32.totalorder %s29, 0
      %p302 = por %p300, %p301
      %s303 = ssub.s32 %s31, %s38
      %p304 = scmp.eq.s32.totalorder %s303, 0
      %s306 = sadd.s32 %s305, 1
      %s307 = scalar_select %p304, %s305, %s306
      %p310 = pneg %p304
      %p311 = scmp.eq.s32.totalorder %s23, 1
      %p312 = por %p310, %p311
      %p313 = scmp.ne.s32.totalorder %s305, %s308
      %p314 = scmp.eq.s32.totalorder %s23, 0
      %p315 = por %p313, %p314
      %p316 = scmp.ne.s32.totalorder %s305, %s308
      %p317 = scmp.eq.s32.totalorder %s28, 1
      %p318 = por %p316, %p317
      %p319 = scmp.ne.s32.totalorder %s308, %s309
      %p320 = scmp.eq.s32.totalorder %s28, 0
      %p321 = por %p319, %p320
      %p322 = scmp.ne.s32.totalorder %s308, %s309
      %p323 = scmp.eq.s32.totalorder %s29, 1
      %p324 = por %p322, %p323
      %p326 = scmp.ne.s32.totalorder %s309, %s325
      %p327 = scmp.eq.s32.totalorder %s29, 0
      %p328 = por %p326, %p327
      %s329 = ssub.s32 %s31, %s38
      %p330 = scmp.eq.s32.totalorder %s329, 0
      %s332 = sadd.s32 %s331, 1
      %s333 = scalar_select %p330, %s331, %s332
      %p336 = pneg %p330
      %p337 = scmp.eq.s32.totalorder %s23, 1
      %p338 = por %p336, %p337
      %p339 = scmp.ne.s32.totalorder %s331, %s334
      %p340 = scmp.eq.s32.totalorder %s23, 0
      %p341 = por %p339, %p340
      %p342 = scmp.ne.s32.totalorder %s331, %s334
      %p343 = scmp.eq.s32.totalorder %s28, 1
      %p344 = por %p342, %p343
      %p345 = scmp.ne.s32.totalorder %s334, %s335
      %p346 = scmp.eq.s32.totalorder %s28, 0
      %p347 = por %p345, %p346
      %p348 = scmp.ne.s32.totalorder %s334, %s335
      %p349 = scmp.eq.s32.totalorder %s29, 1
      %p350 = por %p348, %p349
      %p352 = scmp.ne.s32.totalorder %s335, %s351
      %p353 = scmp.eq.s32.totalorder %s29, 0
      %p354 = por %p352, %p353
      %s355 = ssub.s32 %s31, %s38
      %p356 = scmp.eq.s32.totalorder %s355, 0
      %s358 = sadd.s32 %s357, 1
      %s359 = scalar_select %p356, %s357, %s358
      %p362 = pneg %p356
      %p363 = scmp.eq.s32.totalorder %s23, 1
      %p364 = por %p362, %p363
      %p365 = scmp.ne.s32.totalorder %s357, %s360
      %p366 = scmp.eq.s32.totalorder %s23, 0
      %p367 = por %p365, %p366
      %p368 = scmp.ne.s32.totalorder %s357, %s360
      %p369 = scmp.eq.s32.totalorder %s28, 1
      %p370 = por %p368, %p369
      %p371 = scmp.ne.s32.totalorder %s360, %s361
      %p372 = scmp.eq.s32.totalorder %s28, 0
      %p373 = por %p371, %p372
      %p374 = scmp.ne.s32.totalorder %s360, %s361
      %p375 = scmp.eq.s32.totalorder %s29, 1
      %p376 = por %p374, %p375
      %p378 = scmp.ne.s32.totalorder %s361, %s377
      %p379 = scmp.eq.s32.totalorder %s29, 0
      %p380 = por %p378, %p379
      %s381 = ssub.s32 %s31, %s38
      %p382 = scmp.eq.s32.totalorder %s381, 0
      %s384 = sadd.s32 %s383, 1
      %s385 = scalar_select %p382, %s383, %s384
      %p388 = pneg %p382
      %p389 = scmp.eq.s32.totalorder %s23, 1
      %p390 = por %p388, %p389
      %p391 = scmp.ne.s32.totalorder %s383, %s386
      %p392 = scmp.eq.s32.totalorder %s23, 0
      %p393 = por %p391, %p392
      %p394 = scmp.ne.s32.totalorder %s383, %s386
      %p395 = scmp.eq.s32.totalorder %s28, 1
      %p396 = por %p394, %p395
      %p397 = scmp.ne.s32.totalorder %s386, %s387
      %p398 = scmp.eq.s32.totalorder %s28, 0
      %p399 = por %p397, %p398
      %p400 = scmp.ne.s32.totalorder %s386, %s387
      %p401 = scmp.eq.s32.totalorder %s29, 1
      %p402 = por %p400, %p401
      %p404 = scmp.ne.s32.totalorder %s387, %s403
      %p405 = scmp.eq.s32.totalorder %s29, 0
      %p406 = por %p404, %p405
      %s407 = ssub.s32 %s30, %s42
      %p408 = scmp.eq.s32.totalorder %s407, 0
      %s410 = sadd.s32 %s409, 1
      %s411 = scalar_select %p408, %s409, %s410
      %p414 = pneg %p408
      %p415 = scmp.eq.s32.totalorder %s23, 1
      %p416 = por %p414, %p415
      %p417 = scmp.ne.s32.totalorder %s409, %s412
      %p418 = scmp.eq.s32.totalorder %s23, 0
      %p419 = por %p417, %p418
      %p420 = scmp.ne.s32.totalorder %s409, %s412
      %p421 = scmp.eq.s32.totalorder %s28, 1
      %p422 = por %p420, %p421
      %p423 = scmp.ne.s32.totalorder %s412, %s413
      %p424 = scmp.eq.s32.totalorder %s28, 0
      %p425 = por %p423, %p424
      %p426 = scmp.ne.s32.totalorder %s412, %s413
      %p427 = scmp.eq.s32.totalorder %s29, 1
      %p428 = por %p426, %p427
      %p430 = scmp.ne.s32.totalorder %s413, %s429
      %p431 = scmp.eq.s32.totalorder %s29, 0
      %p432 = por %p430, %p431
      %p433 = scmp.le.s32.totalorder 1, %s23
      %p434 = scmp.lt.s32.totalorder %s23, 3
      %p435 = pnand %p433, %p434
      %p436 = pneg %p435
      // Predicated region
      $region9: #{tpu_custom_call.1} parent=5 // pred_check
        _
      $region10: #{tpu_custom_call.1} parent=5 // pred_check_branch
        %438 = sbr.rel (%p435) target = $region12
      $region11: #{tpu_custom_call.1} parent=5 // pred_region
        %s439 = ssub.s32 %s23, 1
        // Predicated region
        $region13: #{tpu_custom_call.1} parent=11 // pred_check
          %p440 = pneg %p61
        $region14: #{tpu_custom_call.1} parent=11 // pred_check_branch
          %442 = sbr.rel (%p440) target = $region16
        $region15: #{tpu_custom_call.1} parent=11 // pred_region
          %s443 = smul.u32 2, %s32
          %s445 = ssub.s32 256, 256
          %446 = vsyncadd [#allocation4], %s445
          %s447 = smul.addr %s443, 128
          %s448 = scalar_lea.hbm %s0, %s447
          %s449 = sshll.u32 [#allocation3], 4
          %s450 = int_to_ptr.vmem [resolvable:$true] %s449
          %455 = dma.hbm_to_vmem [thread:$0]  %s448, 256, %s450, [#allocation4], 128, 128, 8
        $region16: #{tpu_custom_call.1} parent=11 // pred_fallthru
          _
        // Predicated region
        $region17: #{tpu_custom_call.1} parent=11 // pred_check
          %p456 = pneg %p87
        $region18: #{tpu_custom_call.1} parent=11 // pred_check_branch
          %458 = sbr.rel (%p456) target = $region20
        $region19: #{tpu_custom_call.1} parent=11 // pred_region
          %s459 = smul.u32 2, %s32
          %s461 = ssub.s32 32, 32
          %462 = vsyncadd [#allocation7], %s461
          %s463 = smul.addr %s459, 16
          %s464 = scalar_lea.hbm %s1, %s463
          %s465 = sshll.u32 [#allocation6], 4
          %s466 = int_to_ptr.vmem [resolvable:$true] %s465
          %471 = dma.hbm_to_vmem [thread:$0]  %s464, 32, %s466, [#allocation7], 16, 16, 1
        $region20: #{tpu_custom_call.1} parent=11 // pred_fallthru
          _
      $region12: #{tpu_custom_call.1} parent=5 // pred_fallthru
        _
      %p472 = scmp.lt.s32.totalorder %s23, 2
      // Predicated region
      $region21: #{tpu_custom_call.1} parent=5 // pred_check
        %p473 = pneg %p472
      $region22: #{tpu_custom_call.1} parent=5 // pred_check_branch
        %475 = sbr.rel (%p473) target = $region24
      $region23: #{tpu_custom_call.1} parent=5 // pred_region
        // Predicated region
        $region25: #{tpu_custom_call.1} parent=23 // pred_check
          %p476 = pneg %p107
        $region26: #{tpu_custom_call.1} parent=23 // pred_check_branch
          %478 = sbr.rel (%p476) target = $region28
        $region27: #{tpu_custom_call.1} parent=23 // pred_region
          %s479 = sand.u32 %s23, 1
          %s480 = scalar_lea.sflag [#allocation4], %s479
          %s481 = sand.u32 %s97, 1
          %s482 = smul.addr %s481, 16
          %s483 = scalar_lea.vmem [#allocation8], %s482
          %s485 = ssub.s32 256, 256
          %486 = vsyncadd %s480, %s485
          %s487 = smul.addr %s31, 4
          %s488 = smul.addr %s487, 64
          %s489 = scalar_lea.hbm %s2, %s488
          %s490 = sshll.u32 %s483, 4
          %s491 = int_to_ptr.vmem [resolvable:$true] %s490
          %496 = dma.hbm_to_vmem [thread:$0]  %s489, 256, %s491, %s480, 64, 64, 4
        $region28: #{tpu_custom_call.1} parent=23 // pred_fallthru
          _
        // Predicated region
        $region29: #{tpu_custom_call.1} parent=23 // pred_check
          %p497 = pneg %p133
        $region30: #{tpu_custom_call.1} parent=23 // pred_check_branch
          %499 = sbr.rel (%p497) target = $region32
        $region31: #{tpu_custom_call.1} parent=23 // pred_region
          %s500 = sand.u32 %s23, 1
          %s501 = scalar_lea.sflag [#allocation4], %s500
          %s502 = sand.u32 %s123, 1
          %s503 = scalar_lea.vmem [#allocation9], %s502
          %s505 = ssub.s32 16, 16
          %506 = vsyncadd %s501, %s505
          %s507 = smul.addr %s31, 16
          %s508 = scalar_lea.hbm %s3, %s507
          %s510 = sshll.u32 %s503, 4
          %s511 = int_to_ptr.vmem [resolvable:$true] %s510
          %513 = dma.hbm_to_vmem [thread:$0]  %s508, 16, %s511, %s501
        $region32: #{tpu_custom_call.1} parent=23 // pred_fallthru
          _
        // Predicated region
        $region33: #{tpu_custom_call.1} parent=23 // pred_check
          %p514 = pneg %p159
        $region34: #{tpu_custom_call.1} parent=23 // pred_check_branch
          %516 = sbr.rel (%p514) target = $region36
        $region35: #{tpu_custom_call.1} parent=23 // pred_region
          %s517 = sand.u32 %s23, 1
          %s518 = scalar_lea.sflag [#allocation4], %s517
          %s519 = sand.u32 %s149, 1
          %s520 = smul.addr %s519, 16
          %s521 = scalar_lea.vmem [#allocation10], %s520
          %s523 = ssub.s32 256, 256
          %524 = vsyncadd %s518, %s523
          %s525 = smul.addr %s31, 4
          %s526 = smul.addr %s525, 64
          %s527 = scalar_lea.hbm %s4, %s526
          %s528 = sshll.u32 %s521, 4
          %s529 = int_to_ptr.vmem [resolvable:$true] %s528
          %534 = dma.hbm_to_vmem [thread:$0]  %s527, 256, %s529, %s518, 64, 64, 4
        $region36: #{tpu_custom_call.1} parent=23 // pred_fallthru
          _
        // Predicated region
        $region37: #{tpu_custom_call.1} parent=23 // pred_check
          %p535 = pneg %p185
        $region38: #{tpu_custom_call.1} parent=23 // pred_check_branch
          %537 = sbr.rel (%p535) target = $region40
        $region39: #{tpu_custom_call.1} parent=23 // pred_region
          %s538 = sand.u32 %s23, 1
          %s539 = scalar_lea.sflag [#allocation4], %s538
          %s540 = sand.u32 %s175, 1
          %s541 = scalar_lea.vmem [#allocation11], %s540
          %s543 = ssub.s32 16, 16
          %544 = vsyncadd %s539, %s543
          %s545 = smul.addr %s31, 16
          %s546 = scalar_lea.hbm %s5, %s545
          %s548 = sshll.u32 %s541, 4
          %s549 = int_to_ptr.vmem [resolvable:$true] %s548
          %551 = dma.hbm_to_vmem [thread:$0]  %s546, 16, %s549, %s539
        $region40: #{tpu_custom_call.1} parent=23 // pred_fallthru
          _
        // Predicated region
        $region41: #{tpu_custom_call.1} parent=23 // pred_check
          %p552 = pneg %p211
        $region42: #{tpu_custom_call.1} parent=23 // pred_check_branch
          %554 = sbr.rel (%p552) target = $region44
        $region43: #{tpu_custom_call.1} parent=23 // pred_region
          %s555 = sand.u32 %s23, 1
          %s556 = scalar_lea.sflag [#allocation4], %s555
          %s557 = sand.u32 %s201, 1
          %s558 = scalar_lea.vmem [#allocation12], %s557
          %s560 = ssub.s32 16, 16
          %561 = vsyncadd %s556, %s560
          %s562 = smul.addr %s31, 16
          %s563 = scalar_lea.hbm %s6, %s562
          %s565 = sshll.u32 %s558, 4
          %s566 = int_to_ptr.vmem [resolvable:$true] %s565
          %568 = dma.hbm_to_vmem [thread:$0]  %s563, 16, %s566, %s556
        $region44: #{tpu_custom_call.1} parent=23 // pred_fallthru
          _
        // Predicated region
        $region45: #{tpu_custom_call.1} parent=23 // pred_check
          %p569 = pneg %p237
        $region46: #{tpu_custom_call.1} parent=23 // pred_check_branch
          %571 = sbr.rel (%p569) target = $region48
        $region47: #{tpu_custom_call.1} parent=23 // pred_region
          %s572 = sand.u32 %s23, 1
          %s573 = scalar_lea.sflag [#allocation4], %s572
          %s574 = sand.u32 %s227, 1
          %s575 = scalar_lea.vmem [#allocation13], %s574
          %s577 = ssub.s32 16, 16
          %578 = vsyncadd %s573, %s577
          %s579 = smul.addr %s31, 16
          %s580 = scalar_lea.hbm %s7, %s579
          %s582 = sshll.u32 %s575, 4
          %s583 = int_to_ptr.vmem [resolvable:$true] %s582
          %585 = dma.hbm_to_vmem [thread:$0]  %s580, 16, %s583, %s573
        $region48: #{tpu_custom_call.1} parent=23 // pred_fallthru
          _
        // Predicated region
        $region49: #{tpu_custom_call.1} parent=23 // pred_check
          %p586 = pneg %p263
        $region50: #{tpu_custom_call.1} parent=23 // pred_check_branch
          %588 = sbr.rel (%p586) target = $region52
        $region51: #{tpu_custom_call.1} parent=23 // pred_region
          %s589 = sand.u32 %s23, 1
          %s590 = scalar_lea.sflag [#allocation4], %s589
          %s591 = sand.u32 %s253, 1
          %s592 = smul.addr %s591, 16
          %s593 = scalar_lea.vmem [#allocation14], %s592
          %s595 = ssub.s32 256, 256
          %596 = vsyncadd %s590, %s595
          %s597 = smul.addr %s31, 4
          %s598 = smul.addr %s597, 64
          %s599 = scalar_lea.hbm %s8, %s598
          %s600 = sshll.u32 %s593, 4
          %s601 = int_to_ptr.vmem [resolvable:$true] %s600
          %606 = dma.hbm_to_vmem [thread:$0]  %s599, 256, %s601, %s590, 64, 64, 4
        $region52: #{tpu_custom_call.1} parent=23 // pred_fallthru
          _
        // Predicated region
        $region53: #{tpu_custom_call.1} parent=23 // pred_check
          %p607 = pneg %p289
        $region54: #{tpu_custom_call.1} parent=23 // pred_check_branch
          %609 = sbr.rel (%p607) target = $region56
        $region55: #{tpu_custom_call.1} parent=23 // pred_region
          %s610 = sand.u32 %s23, 1
          %s611 = scalar_lea.sflag [#allocation4], %s610
          %s612 = sand.u32 %s279, 1
          %s613 = scalar_lea.vmem [#allocation15], %s612
          %s615 = ssub.s32 16, 16
          %616 = vsyncadd %s611, %s615
          %s617 = smul.addr %s31, 16
          %s618 = scalar_lea.hbm %s9, %s617
          %s620 = sshll.u32 %s613, 4
          %s621 = int_to_ptr.vmem [resolvable:$true] %s620
          %623 = dma.hbm_to_vmem [thread:$0]  %s618, 16, %s621, %s611
        $region56: #{tpu_custom_call.1} parent=23 // pred_fallthru
          _
        // Predicated region
        $region57: #{tpu_custom_call.1} parent=23 // pred_check
          %p624 = pneg %p315
        $region58: #{tpu_custom_call.1} parent=23 // pred_check_branch
          %626 = sbr.rel (%p624) target = $region60
        $region59: #{tpu_custom_call.1} parent=23 // pred_region
          %s627 = sand.u32 %s23, 1
          %s628 = scalar_lea.sflag [#allocation4], %s627
          %s629 = sand.u32 %s305, 1
          %s630 = smul.addr %s629, 32
          %s631 = scalar_lea.vmem [#allocation16], %s630
          %s633 = ssub.s32 512, 512
          %634 = vsyncadd %s628, %s633
          %s635 = smul.addr %s31, 8
          %s636 = smul.addr %s635, 64
          %s637 = scalar_lea.hbm %s10, %s636
          %s638 = sshll.u32 %s631, 4
          %s639 = int_to_ptr.vmem [resolvable:$true] %s638
          %644 = dma.hbm_to_vmem [thread:$0]  %s637, 512, %s639, %s628, 64, 64, 4
        $region60: #{tpu_custom_call.1} parent=23 // pred_fallthru
          _
        // Predicated region
        $region61: #{tpu_custom_call.1} parent=23 // pred_check
          %p645 = pneg %p341
        $region62: #{tpu_custom_call.1} parent=23 // pred_check_branch
          %647 = sbr.rel (%p645) target = $region64
        $region63: #{tpu_custom_call.1} parent=23 // pred_region
          %s648 = sand.u32 %s23, 1
          %s649 = scalar_lea.sflag [#allocation4], %s648
          %s650 = sand.u32 %s331, 1
          %s651 = scalar_lea.vmem [#allocation17], %s650
          %s653 = ssub.s32 16, 16
          %654 = vsyncadd %s649, %s653
          %s655 = smul.addr %s31, 16
          %s656 = scalar_lea.hbm %s11, %s655
          %s658 = sshll.u32 %s651, 4
          %s659 = int_to_ptr.vmem [resolvable:$true] %s658
          %661 = dma.hbm_to_vmem [thread:$0]  %s656, 16, %s659, %s649
        $region64: #{tpu_custom_call.1} parent=23 // pred_fallthru
          _
        // Predicated region
        $region65: #{tpu_custom_call.1} parent=23 // pred_check
          %p662 = pneg %p367
        $region66: #{tpu_custom_call.1} parent=23 // pred_check_branch
          %664 = sbr.rel (%p662) target = $region68
        $region67: #{tpu_custom_call.1} parent=23 // pred_region
          %s665 = sand.u32 %s23, 1
          %s666 = scalar_lea.sflag [#allocation4], %s665
          %s667 = sand.u32 %s357, 1
          %s668 = scalar_lea.vmem [#allocation18], %s667
          %s670 = ssub.s32 16, 16
          %671 = vsyncadd %s666, %s670
          %s672 = smul.addr %s31, 16
          %s673 = scalar_lea.hbm %s12, %s672
          %s675 = sshll.u32 %s668, 4
          %s676 = int_to_ptr.vmem [resolvable:$true] %s675
          %678 = dma.hbm_to_vmem [thread:$0]  %s673, 16, %s676, %s666
        $region68: #{tpu_custom_call.1} parent=23 // pred_fallthru
          _
        // Predicated region
        $region69: #{tpu_custom_call.1} parent=23 // pred_check
          %p679 = pneg %p393
        $region70: #{tpu_custom_call.1} parent=23 // pred_check_branch
          %681 = sbr.rel (%p679) target = $region72
        $region71: #{tpu_custom_call.1} parent=23 // pred_region
          %s682 = sand.u32 %s23, 1
          %s683 = scalar_lea.sflag [#allocation4], %s682
          %s684 = sand.u32 %s383, 1
          %s685 = scalar_lea.vmem [#allocation19], %s684
          %s687 = ssub.s32 16, 16
          %688 = vsyncadd %s683, %s687
          %s689 = smul.addr %s31, 16
          %s690 = scalar_lea.hbm %s13, %s689
          %s692 = sshll.u32 %s685, 4
          %s693 = int_to_ptr.vmem [resolvable:$true] %s692
          %695 = dma.hbm_to_vmem [thread:$0]  %s690, 16, %s693, %s683
        $region72: #{tpu_custom_call.1} parent=23 // pred_fallthru
          _
      $region24: #{tpu_custom_call.1} parent=5 // pred_fallthru
        _
      %p696 = scmp.le.s32.totalorder 1, %s23
      %p697 = scmp.lt.s32.totalorder %s23, 3
      %p698 = pnand %p696, %p697
      %p699 = pneg %p698
      // Predicated region
      $region73: #{tpu_custom_call.1} parent=5 // pred_check
        _
      $region74: #{tpu_custom_call.1} parent=5 // pred_check_branch
        %701 = sbr.rel (%p698) target = $region76
      $region75: #{tpu_custom_call.1} parent=5 // pred_region
        %s702 = ssub.s32 %s23, 1
        // Predicated region
        $region77: #{tpu_custom_call.1} parent=75 // pred_check
          %p703 = pneg %p61
        $region78: #{tpu_custom_call.1} parent=75 // pred_check_branch
          %705 = sbr.rel (%p703) target = $region80
        $region79: #{tpu_custom_call.1} parent=75 // pred_region
          %706 = dma.done [#allocation4], 256
        $region80: #{tpu_custom_call.1} parent=75 // pred_fallthru
          _
        // Predicated region
        $region81: #{tpu_custom_call.1} parent=75 // pred_check
          %p707 = pneg %p87
        $region82: #{tpu_custom_call.1} parent=75 // pred_check_branch
          %709 = sbr.rel (%p707) target = $region84
        $region83: #{tpu_custom_call.1} parent=75 // pred_region
          %710 = dma.done [#allocation7], 32
        $region84: #{tpu_custom_call.1} parent=75 // pred_fallthru
          _
        %s711 = sand.u32 %s28, 1
        %s712 = scalar_lea.sflag [#allocation4], %s711
        %s713 = sand.u32 %s100, 1
        %s714 = smul.addr %s713, 16
        %s715 = scalar_lea.vmem [#allocation8], %s714
        // Predicated region
        $region85: #{tpu_custom_call.1} parent=75 // pred_check
          %p716 = pneg %p113
        $region86: #{tpu_custom_call.1} parent=75 // pred_check_branch
          %718 = sbr.rel (%p716) target = $region88
        $region87: #{tpu_custom_call.1} parent=75 // pred_region
          %719 = dma.done %s712, 256
        $region88: #{tpu_custom_call.1} parent=75 // pred_fallthru
          _
        %s720 = sand.u32 %s28, 1
        %s721 = scalar_lea.sflag [#allocation4], %s720
        %s722 = sand.u32 %s126, 1
        %s723 = scalar_lea.vmem [#allocation9], %s722
        // Predicated region
        $region89: #{tpu_custom_call.1} parent=75 // pred_check
          %p724 = pneg %p139
        $region90: #{tpu_custom_call.1} parent=75 // pred_check_branch
          %726 = sbr.rel (%p724) target = $region92
        $region91: #{tpu_custom_call.1} parent=75 // pred_region
          %727 = dma.done %s721, 16
        $region92: #{tpu_custom_call.1} parent=75 // pred_fallthru
          _
        %s728 = sand.u32 %s28, 1
        %s729 = scalar_lea.sflag [#allocation4], %s728
        %s730 = sand.u32 %s152, 1
        %s731 = smul.addr %s730, 16
        %s732 = scalar_lea.vmem [#allocation10], %s731
        // Predicated region
        $region93: #{tpu_custom_call.1} parent=75 // pred_check
          %p733 = pneg %p165
        $region94: #{tpu_custom_call.1} parent=75 // pred_check_branch
          %735 = sbr.rel (%p733) target = $region96
        $region95: #{tpu_custom_call.1} parent=75 // pred_region
          %736 = dma.done %s729, 256
        $region96: #{tpu_custom_call.1} parent=75 // pred_fallthru
          _
        %s737 = sand.u32 %s28, 1
        %s738 = scalar_lea.sflag [#allocation4], %s737
        %s739 = sand.u32 %s178, 1
        %s740 = scalar_lea.vmem [#allocation11], %s739
        // Predicated region
        $region97: #{tpu_custom_call.1} parent=75 // pred_check
          %p741 = pneg %p191
        $region98: #{tpu_custom_call.1} parent=75 // pred_check_branch
          %743 = sbr.rel (%p741) target = $region100
        $region99: #{tpu_custom_call.1} parent=75 // pred_region
          %744 = dma.done %s738, 16
        $region100: #{tpu_custom_call.1} parent=75 // pred_fallthru
          _
        %s745 = sand.u32 %s28, 1
        %s746 = scalar_lea.sflag [#allocation4], %s745
        %s747 = sand.u32 %s204, 1
        %s748 = scalar_lea.vmem [#allocation12], %s747
        // Predicated region
        $region101: #{tpu_custom_call.1} parent=75 // pred_check
          %p749 = pneg %p217
        $region102: #{tpu_custom_call.1} parent=75 // pred_check_branch
          %751 = sbr.rel (%p749) target = $region104
        $region103: #{tpu_custom_call.1} parent=75 // pred_region
          %752 = dma.done %s746, 16
        $region104: #{tpu_custom_call.1} parent=75 // pred_fallthru
          _
        %s753 = sand.u32 %s28, 1
        %s754 = scalar_lea.sflag [#allocation4], %s753
        %s755 = sand.u32 %s230, 1
        %s756 = scalar_lea.vmem [#allocation13], %s755
        // Predicated region
        $region105: #{tpu_custom_call.1} parent=75 // pred_check
          %p757 = pneg %p243
        $region106: #{tpu_custom_call.1} parent=75 // pred_check_branch
          %759 = sbr.rel (%p757) target = $region108
        $region107: #{tpu_custom_call.1} parent=75 // pred_region
          %760 = dma.done %s754, 16
        $region108: #{tpu_custom_call.1} parent=75 // pred_fallthru
          _
        %s761 = sand.u32 %s28, 1
        %s762 = scalar_lea.sflag [#allocation4], %s761
        %s763 = sand.u32 %s256, 1
        %s764 = smul.addr %s763, 16
        %s765 = scalar_lea.vmem [#allocation14], %s764
        // Predicated region
        $region109: #{tpu_custom_call.1} parent=75 // pred_check
          %p766 = pneg %p269
        $region110: #{tpu_custom_call.1} parent=75 // pred_check_branch
          %768 = sbr.rel (%p766) target = $region112
        $region111: #{tpu_custom_call.1} parent=75 // pred_region
          %769 = dma.done %s762, 256
        $region112: #{tpu_custom_call.1} parent=75 // pred_fallthru
          _
        %s770 = sand.u32 %s28, 1
        %s771 = scalar_lea.sflag [#allocation4], %s770
        %s772 = sand.u32 %s282, 1
        %s773 = scalar_lea.vmem [#allocation15], %s772
        // Predicated region
        $region113: #{tpu_custom_call.1} parent=75 // pred_check
          %p774 = pneg %p295
        $region114: #{tpu_custom_call.1} parent=75 // pred_check_branch
          %776 = sbr.rel (%p774) target = $region116
        $region115: #{tpu_custom_call.1} parent=75 // pred_region
          %777 = dma.done %s771, 16
        $region116: #{tpu_custom_call.1} parent=75 // pred_fallthru
          _
        %s778 = sand.u32 %s28, 1
        %s779 = scalar_lea.sflag [#allocation4], %s778
        %s780 = sand.u32 %s308, 1
        %s781 = smul.addr %s780, 32
        %s782 = scalar_lea.vmem [#allocation16], %s781
        // Predicated region
        $region117: #{tpu_custom_call.1} parent=75 // pred_check
          %p783 = pneg %p321
        $region118: #{tpu_custom_call.1} parent=75 // pred_check_branch
          %785 = sbr.rel (%p783) target = $region120
        $region119: #{tpu_custom_call.1} parent=75 // pred_region
          %786 = dma.done %s779, 512
        $region120: #{tpu_custom_call.1} parent=75 // pred_fallthru
          _
        %s787 = sand.u32 %s28, 1
        %s788 = scalar_lea.sflag [#allocation4], %s787
        %s789 = sand.u32 %s334, 1
        %s790 = scalar_lea.vmem [#allocation17], %s789
        // Predicated region
        $region121: #{tpu_custom_call.1} parent=75 // pred_check
          %p791 = pneg %p347
        $region122: #{tpu_custom_call.1} parent=75 // pred_check_branch
          %793 = sbr.rel (%p791) target = $region124
        $region123: #{tpu_custom_call.1} parent=75 // pred_region
          %794 = dma.done %s788, 16
        $region124: #{tpu_custom_call.1} parent=75 // pred_fallthru
          _
        %s795 = sand.u32 %s28, 1
        %s796 = scalar_lea.sflag [#allocation4], %s795
        %s797 = sand.u32 %s360, 1
        %s798 = scalar_lea.vmem [#allocation18], %s797
        // Predicated region
        $region125: #{tpu_custom_call.1} parent=75 // pred_check
          %p799 = pneg %p373
        $region126: #{tpu_custom_call.1} parent=75 // pred_check_branch
          %801 = sbr.rel (%p799) target = $region128
        $region127: #{tpu_custom_call.1} parent=75 // pred_region
          %802 = dma.done %s796, 16
        $region128: #{tpu_custom_call.1} parent=75 // pred_fallthru
          _
        %s803 = sand.u32 %s28, 1
        %s804 = scalar_lea.sflag [#allocation4], %s803
        %s805 = sand.u32 %s386, 1
        %s806 = scalar_lea.vmem [#allocation19], %s805
        // Predicated region
        $region129: #{tpu_custom_call.1} parent=75 // pred_check
          %p807 = pneg %p399
        $region130: #{tpu_custom_call.1} parent=75 // pred_check_branch
          %809 = sbr.rel (%p807) target = $region132
        $region131: #{tpu_custom_call.1} parent=75 // pred_region
          %810 = dma.done %s804, 16
        $region132: #{tpu_custom_call.1} parent=75 // pred_fallthru
          _
        %p811 = pneg %p61
        %p812 = pneg %p58
        %p813 = pneg %p87
        %p814 = pneg %p84
        %s815 = sand.u32 %s28, 1
        %s816 = scalar_lea.sflag [#allocation4], %s815
        %s817 = sand.u32 %s100, 1
        %s818 = smul.addr %s817, 16
        %s819 = scalar_lea.vmem [#allocation8], %s818
        %p820 = pneg %p113
        %p821 = pneg %p110
        %s822 = sand.u32 %s28, 1
        %s823 = scalar_lea.sflag [#allocation4], %s822
        %s824 = sand.u32 %s126, 1
        %s825 = scalar_lea.vmem [#allocation9], %s824
        %p826 = pneg %p139
        %p827 = pneg %p136
        %s828 = sand.u32 %s28, 1
        %s829 = scalar_lea.sflag [#allocation4], %s828
        %s830 = sand.u32 %s152, 1
        %s831 = smul.addr %s830, 16
        %s832 = scalar_lea.vmem [#allocation10], %s831
        %p833 = pneg %p165
        %p834 = pneg %p162
        %s835 = sand.u32 %s28, 1
        %s836 = scalar_lea.sflag [#allocation4], %s835
        %s837 = sand.u32 %s178, 1
        %s838 = scalar_lea.vmem [#allocation11], %s837
        %p839 = pneg %p191
        %p840 = pneg %p188
        %s841 = sand.u32 %s28, 1
        %s842 = scalar_lea.sflag [#allocation4], %s841
        %s843 = sand.u32 %s204, 1
        %s844 = scalar_lea.vmem [#allocation12], %s843
        %p845 = pneg %p217
        %p846 = pneg %p214
        %s847 = sand.u32 %s28, 1
        %s848 = scalar_lea.sflag [#allocation4], %s847
        %s849 = sand.u32 %s230, 1
        %s850 = scalar_lea.vmem [#allocation13], %s849
        %p851 = pneg %p243
        %p852 = pneg %p240
        %s853 = sand.u32 %s28, 1
        %s854 = scalar_lea.sflag [#allocation4], %s853
        %s855 = sand.u32 %s256, 1
        %s856 = smul.addr %s855, 16
        %s857 = scalar_lea.vmem [#allocation14], %s856
        %p858 = pneg %p269
        %p859 = pneg %p266
        %s860 = sand.u32 %s28, 1
        %s861 = scalar_lea.sflag [#allocation4], %s860
        %s862 = sand.u32 %s282, 1
        %s863 = scalar_lea.vmem [#allocation15], %s862
        %p864 = pneg %p295
        %p865 = pneg %p292
        %s866 = sand.u32 %s28, 1
        %s867 = scalar_lea.sflag [#allocation4], %s866
        %s868 = sand.u32 %s308, 1
        %s869 = smul.addr %s868, 32
        %s870 = scalar_lea.vmem [#allocation16], %s869
        %p871 = pneg %p321
        %p872 = pneg %p318
        %s873 = sand.u32 %s28, 1
        %s874 = scalar_lea.sflag [#allocation4], %s873
        %s875 = sand.u32 %s334, 1
        %s876 = scalar_lea.vmem [#allocation17], %s875
        %p877 = pneg %p347
        %p878 = pneg %p344
        %s879 = sand.u32 %s28, 1
        %s880 = scalar_lea.sflag [#allocation4], %s879
        %s881 = sand.u32 %s360, 1
        %s882 = scalar_lea.vmem [#allocation18], %s881
        %p883 = pneg %p373
        %p884 = pneg %p370
        %s885 = sand.u32 %s28, 1
        %s886 = scalar_lea.sflag [#allocation4], %s885
        %s887 = sand.u32 %s386, 1
        %s888 = scalar_lea.vmem [#allocation19], %s887
        %p889 = pneg %p399
        %p890 = pneg %p396
        %p891 = pneg %p425
        %p892 = pneg %p422
        %s893 = smul.u32 2, %s32
        %s894 = smul.u32 2, %s32
        %s895 = smul.u32 2, %s32
        %p897 = scmp.eq.s32.totalorder %s33, 0
        // Predicated region
        $region133: #{tpu_custom_call.1} parent=75 // pred_check
          %p898 = pneg %p897
        $region134: #{tpu_custom_call.1} parent=75 // pred_check_branch
          %900 = sbr.rel (%p898) target = $region136
        $region135: #{tpu_custom_call.1} parent=75 // pred_region
          %v901 = vld [vmem:[#allocation3] sm:$0xff]
          %v902 = vld [vmem:[#allocation3 + $0x8] sm:$0xff]
          %vm903 = vcmask 261120
          %904 = vst.msk [vmem:[#allocation20] sm:$0xff] %vm903, %v901
          %905 = vst.msk [vmem:[#allocation20 + $0x8] sm:$0xff] %vm903, %v902
        $region136: #{tpu_custom_call.1} parent=75 // pred_fallthru
          _
        %v906 = vld [vmem:[#allocation20] sm:$0xff]
        %v907 = vld [vmem:[#allocation20 + $0x8] sm:$0xff]
        %v908 = vld [vmem:[#allocation6] sm:$0x1]
        %v909 = vld [vmem:[#allocation6 + $0x1] sm:$0x1]
        %v910 = vpack.c.bf16 %v907, %v906
        %v911 = vld [vmem:[%s715] sm:$0xf]
        %v912 = vld [vmem:[%s715 + $0x4] sm:$0xf]
        %v913 = vld [vmem:[%s715 + $0x8] sm:$0xf]
        %v914 = vld [vmem:[%s715 + $0xc] sm:$0xf]
        %v915 = vld [vmem:[%s723] sm:$0x1]
        %v917 = vlaneseq
        %v918 = vshrl.u32 %v917, 7
        %v919 = vsub.s32 0, %v918
        %v920 = vrot.slane %v915, %v919
        %v926 = vunpack.c.l.b16 %v911
        %v927 = vunpack.c.l.b16 %v912
        %v928 = vunpack.c.l.b16 %v913
        %v929 = vunpack.c.l.b16 %v914
        %v930 = vpack.c.b16 %v927, %v926
        %v931 = vpack.c.b16 %v929, %v928
        %vm934 = vcmask 261120
        %v936 = vsel %vm934, %v910, 0
        %938 = vmatprep.subr.bf16.mxu0 0
        %939 = vmatpush1.bf16.msra.mxu0 %v930
        %940 = vmatprep.subr.bf16.mxu0 0
        %941 = vmatpush1.bf16.msra.mxu0 %v931
        %942 = vmatprep.subr.bf16.mxu0 0
        %943 = vmatpush1.bf16.msra.mxu0 0
        %944 = vmatprep.subr.bf16.mxu0 0
        %945 = vmatpush1.bf16.msra.mxu0 0
        %946 = vmatprep.subr.bf16.mxu0 0
        %947 = vmatpush1.bf16.msra.mxu0 0
        %948 = vmatprep.subr.bf16.mxu0 0
        %949 = vmatpush1.bf16.msra.mxu0 0
        %950 = vmatprep.subr.bf16.mxu0 0
        %951 = vmatpush1.bf16.msra.mxu0 0
        %952 = vmatprep.subr.bf16.mxu0 0
        %953 = vmatpush1.bf16.msra.mxu0 0
        %954 = vmatprep.subr.bf16.mxu0 0
        %955 = vmatpush1.bf16.msra.mxu0 0
        %956 = vmatprep.subr.bf16.mxu0 0
        %957 = vmatpush1.bf16.msra.mxu0 0
        %958 = vmatprep.subr.bf16.mxu0 0
        %959 = vmatpush1.bf16.msra.mxu0 0
        %960 = vmatprep.subr.bf16.mxu0 0
        %961 = vmatpush1.bf16.msra.mxu0 0
        %962 = vmatprep.subr.bf16.mxu0 0
        %963 = vmatpush1.bf16.msra.mxu0 0
        %964 = vmatprep.subr.bf16.mxu0 0
        %965 = vmatpush1.bf16.msra.mxu0 0
        %966 = vmatprep.subr.bf16.mxu0 0
        %967 = vmatpush1.bf16.msra.mxu0 0
        %968 = vmatprep.subr.bf16.mxu0 0
        %969 = vmatpush1.bf16.msra.mxu0 0
        %970 = vmatprep.mubr.bf16.mxu0 0
        %971 = vmatmul.mubr.bf16.gmra.mrb[0].mxu0 %v936
        %v972 = vpop.f32.mrb[0].mxu0
        %v973 = vadd.f32 %v920, %v972
        %v974 = vpop.f32.mrb[0].mxu0
        %v975 = vpop.f32.mrb[0].mxu0
        %v976 = vadd.f32 %v920, %v975
        %v977 = vpop.f32.mrb[0].mxu0
        %978 = vdwg.mxu0
        %v979 = vpack.c.bf16 %v973, %v973
        %v980 = vpack.c.bf16 %v976, %v976
        %v983 = vlaneseq
        %v984 = vshrl.u32 %v983, 7
        %v985 = vsub.s32 0, %v984
        %v986 = vrot.slane %v908, %v985
        %v987 = vlaneseq
        %v988 = vshrl.u32 %v987, 7
        %v989 = vsub.s32 0, %v988
        %v990 = vrot.slane %v909, %v989
        %994 = vrot.lane.b32.xlu0 %v979, 96
        %v995 = vpop.permute.xlu0 %994
        %vm996 = vcmask 64512
        %v998 = vsel %vm996, %v979, 0
        %v1001 = vsel %vm996, %v995, 0
        %1003 = vmatprep.subr.bf16.mxu0 0
        %1004 = vmatpush1.bf16.xpose.msra.mxu0 %v1001
        %1005 = vmatprep.subr.bf16.mxu0 0
        %1006 = vmatpush1.bf16.xpose.msra.mxu0 0
        %1007 = vmatprep.subr.bf16.mxu0 0
        %1008 = vmatpush1.bf16.xpose.msra.mxu0 0
        %1009 = vmatprep.subr.bf16.mxu0 0
        %1010 = vmatpush1.bf16.xpose.msra.mxu0 0
        %1011 = vmatprep.subr.bf16.mxu0 0
        %1012 = vmatpush1.bf16.xpose.msra.mxu0 0
        %1013 = vmatprep.subr.bf16.mxu0 0
        %1014 = vmatpush1.bf16.xpose.msra.mxu0 0
        %1015 = vmatprep.subr.bf16.mxu0 0
        %1016 = vmatpush1.bf16.xpose.msra.mxu0 0
        %1017 = vmatprep.subr.bf16.mxu0 0
        %1018 = vmatpush1.bf16.xpose.msra.mxu0 0
        %1019 = vmatprep.subr.bf16.mxu0 0
        %1020 = vmatpush1.bf16.xpose.msra.mxu0 0
        %1021 = vmatprep.subr.bf16.mxu0 0
        %1022 = vmatpush1.bf16.xpose.msra.mxu0 0
        %1023 = vmatprep.subr.bf16.mxu0 0
        %1024 = vmatpush1.bf16.xpose.msra.mxu0 0
        %1025 = vmatprep.subr.bf16.mxu0 0
        %1026 = vmatpush1.bf16.xpose.msra.mxu0 0
        %1027 = vmatprep.subr.bf16.mxu0 0
        %1028 = vmatpush1.bf16.xpose.msra.mxu0 0
        %1029 = vmatprep.subr.bf16.mxu0 0
        %1030 = vmatpush1.bf16.xpose.msra.mxu0 0
        %1031 = vmatprep.subr.bf16.mxu0 0
        %1032 = vmatpush1.bf16.xpose.msra.mxu0 0
        %1033 = vmatprep.subr.bf16.mxu0 0
        %1034 = vmatpush1.bf16.xpose.msra.mxu0 0
        %1035 = vmatprep.mubr.bf16.mxu0 0
        %1036 = vmatmul.mubr.bf16.gmra.mrb[0].mxu0 %v998
        %v1037 = vpop.f32.mrb[0].mxu0
        %v1038 = vadd.f32 %v986, %v1037
        %v1039 = vpop.f32.mrb[0].mxu0
        %v1040 = vpop.f32.mrb[0].mxu0
        %v1041 = vpop.f32.mrb[0].mxu0
        %1042 = vdwg.mxu0
        %1044 = vrot.lane.b32.xlu0 %v980, 96
        %v1045 = vpop.permute.xlu0 %1044
        %v1047 = vsel %vm996, %v980, 0
        %v1050 = vsel %vm996, %v1045, 0
        %1052 = vmatprep.subr.bf16.mxu0 0
        %1053 = vmatpush1.bf16.xpose.msra.mxu0 %v1050
        %1054 = vmatprep.subr.bf16.mxu0 0
        %1055 = vmatpush1.bf16.xpose.msra.mxu0 0
        %1056 = vmatprep.subr.bf16.mxu0 0
        %1057 = vmatpush1.bf16.xpose.msra.mxu0 0
        %1058 = vmatprep.subr.bf16.mxu0 0
        %1059 = vmatpush1.bf16.xpose.msra.mxu0 0
        %1060 = vmatprep.subr.bf16.mxu0 0
        %1061 = vmatpush1.bf16.xpose.msra.mxu0 0
        %1062 = vmatprep.subr.bf16.mxu0 0
        %1063 = vmatpush1.bf16.xpose.msra.mxu0 0
        %1064 = vmatprep.subr.bf16.mxu0 0
        %1065 = vmatpush1.bf16.xpose.msra.mxu0 0
        %1066 = vmatprep.subr.bf16.mxu0 0
        %1067 = vmatpush1.bf16.xpose.msra.mxu0 0
        %1068 = vmatprep.subr.bf16.mxu0 0
        %1069 = vmatpush1.bf16.xpose.msra.mxu0 0
        %1070 = vmatprep.subr.bf16.mxu0 0
        %1071 = vmatpush1.bf16.xpose.msra.mxu0 0
        %1072 = vmatprep.subr.bf16.mxu0 0
        %1073 = vmatpush1.bf16.xpose.msra.mxu0 0
        %1074 = vmatprep.subr.bf16.mxu0 0
        %1075 = vmatpush1.bf16.xpose.msra.mxu0 0
        %1076 = vmatprep.subr.bf16.mxu0 0
        %1077 = vmatpush1.bf16.xpose.msra.mxu0 0
        %1078 = vmatprep.subr.bf16.mxu0 0
        %1079 = vmatpush1.bf16.xpose.msra.mxu0 0
        %1080 = vmatprep.subr.bf16.mxu0 0
        %1081 = vmatpush1.bf16.xpose.msra.mxu0 0
        %1082 = vmatprep.subr.bf16.mxu0 0
        %1083 = vmatpush1.bf16.xpose.msra.mxu0 0
        %1084 = vmatprep.mubr.bf16.mxu0 0
        %1085 = vmatmul.mubr.bf16.gmra.mrb[0].mxu0 %v1047
        %v1086 = vpop.f32.mrb[0].mxu0
        %v1087 = vadd.f32 %v990, %v1086
        %v1088 = vpop.f32.mrb[0].mxu0
        %v1089 = vpop.f32.mrb[0].mxu0
        %v1090 = vpop.f32.mrb[0].mxu0
        %1091 = vdwg.mxu0
        %v1092 = vsel %vm996, %v1038, -inf
        %1093 = vmax.xlane.f32.xlu0 %v1092
        %v1094 = vpop.xlane.xlu0 %1093
        %v1095 = vsel %vm996, %v1087, -inf
        %1096 = vmax.xlane.f32.xlu0 %v1095
        %v1097 = vpop.xlane.xlu0 %1096
        %v1098 = vsub.f32 %v1038, %v1094
        %v1099 = vsub.f32 %v1087, %v1097
        %v1100 = vmul.f32 %v1098, 1.442695
        %v1101 = vpow.pop %v1100
        %v1102 = vmul.f32 %v1099, 1.442695
        %v1103 = vpow.pop %v1102
        %v1104 = vsel %vm996, %v1101, 0.0
        %1105 = vadd.xlane.f32.xlu0 %v1104
        %v1106 = vpop.xlane.xlu0 %1105
        %v1107 = vsel %vm996, %v1103, 0.0
        %1108 = vadd.xlane.f32.xlu0 %v1107
        %v1109 = vpop.xlane.xlu0 %1108
        %v1110 = vrcp.pop %v1106
        %v1111 = vrcp.pop %v1109
        %v1112 = vmul.f32 %v1101, %v1110
        %v1113 = vmul.f32 %v1103, %v1111
        %v1114 = vpack.c.bf16 %v1112, %v1112
        %v1115 = vpack.c.bf16 %v1113, %v1113
        %1116 = vrot.lane.b32.xlu0 %v979, 64
        %v1117 = vpop.permute.xlu0 %1116
        %v1119 = vsel %vm996, %v1114, 0
        %vm1121 = vcmask 1043456
        %v1123 = vsel %vm1121, %v1117, 0
        %1125 = vmatprep.subr.bf16.mxu0 0
        %1126 = vmatpush1.bf16.msra.mxu0 %v1123
        %1127 = vmatprep.subr.bf16.mxu0 0
        %1128 = vmatpush1.bf16.msra.mxu0 0
        %1129 = vmatprep.subr.bf16.mxu0 0
        %1130 = vmatpush1.bf16.msra.mxu0 0
        %1131 = vmatprep.subr.bf16.mxu0 0
        %1132 = vmatpush1.bf16.msra.mxu0 0
        %1133 = vmatprep.subr.bf16.mxu0 0
        %1134 = vmatpush1.bf16.msra.mxu0 0
        %1135 = vmatprep.subr.bf16.mxu0 0
        %1136 = vmatpush1.bf16.msra.mxu0 0
        %1137 = vmatprep.subr.bf16.mxu0 0
        %1138 = vmatpush1.bf16.msra.mxu0 0
        %1139 = vmatprep.subr.bf16.mxu0 0
        %1140 = vmatpush1.bf16.msra.mxu0 0
        %1141 = vmatprep.subr.bf16.mxu0 0
        %1142 = vmatpush1.bf16.msra.mxu0 0
        %1143 = vmatprep.subr.bf16.mxu0 0
        %1144 = vmatpush1.bf16.msra.mxu0 0
        %1145 = vmatprep.subr.bf16.mxu0 0
        %1146 = vmatpush1.bf16.msra.mxu0 0
        %1147 = vmatprep.subr.bf16.mxu0 0
        %1148 = vmatpush1.bf16.msra.mxu0 0
        %1149 = vmatprep.subr.bf16.mxu0 0
        %1150 = vmatpush1.bf16.msra.mxu0 0
        %1151 = vmatprep.subr.bf16.mxu0 0
        %1152 = vmatpush1.bf16.msra.mxu0 0
        %1153 = vmatprep.subr.bf16.mxu0 0
        %1154 = vmatpush1.bf16.msra.mxu0 0
        %1155 = vmatprep.subr.bf16.mxu0 0
        %1156 = vmatpush1.bf16.msra.mxu0 0
        %1157 = vmatprep.mubr.bf16.mxu0 0
        %1158 = vmatmul.mubr.bf16.gmra.mrb[0].mxu0 %v1119
        %v1159 = vpop.f32.mrb[0].mxu0
        %v1160 = vadd.f32 0.0, %v1159
        %v1161 = vpop.f32.mrb[0].mxu0
        %v1162 = vpop.f32.mrb[0].mxu0
        %v1163 = vpop.f32.mrb[0].mxu0
        %1164 = vdwg.mxu0
        %1165 = vrot.lane.b32.xlu0 %v980, 64
        %v1166 = vpop.permute.xlu0 %1165
        %v1168 = vsel %vm996, %v1115, 0
        %v1171 = vsel %vm1121, %v1166, 0
        %1173 = vmatprep.subr.bf16.mxu0 0
        %1174 = vmatpush1.bf16.msra.mxu0 %v1171
        %1175 = vmatprep.subr.bf16.mxu0 0
        %1176 = vmatpush1.bf16.msra.mxu0 0
        %1177 = vmatprep.subr.bf16.mxu0 0
        %1178 = vmatpush1.bf16.msra.mxu0 0
        %1179 = vmatprep.subr.bf16.mxu0 0
        %1180 = vmatpush1.bf16.msra.mxu0 0
        %1181 = vmatprep.subr.bf16.mxu0 0
        %1182 = vmatpush1.bf16.msra.mxu0 0
        %1183 = vmatprep.subr.bf16.mxu0 0
        %1184 = vmatpush1.bf16.msra.mxu0 0
        %1185 = vmatprep.subr.bf16.mxu0 0
        %1186 = vmatpush1.bf16.msra.mxu0 0
        %1187 = vmatprep.subr.bf16.mxu0 0
        %1188 = vmatpush1.bf16.msra.mxu0 0
        %1189 = vmatprep.subr.bf16.mxu0 0
        %1190 = vmatpush1.bf16.msra.mxu0 0
        %1191 = vmatprep.subr.bf16.mxu0 0
        %1192 = vmatpush1.bf16.msra.mxu0 0
        %1193 = vmatprep.subr.bf16.mxu0 0
        %1194 = vmatpush1.bf16.msra.mxu0 0
        %1195 = vmatprep.subr.bf16.mxu0 0
        %1196 = vmatpush1.bf16.msra.mxu0 0
        %1197 = vmatprep.subr.bf16.mxu0 0
        %1198 = vmatpush1.bf16.msra.mxu0 0
        %1199 = vmatprep.subr.bf16.mxu0 0
        %1200 = vmatpush1.bf16.msra.mxu0 0
        %1201 = vmatprep.subr.bf16.mxu0 0
        %1202 = vmatpush1.bf16.msra.mxu0 0
        %1203 = vmatprep.subr.bf16.mxu0 0
        %1204 = vmatpush1.bf16.msra.mxu0 0
        %1205 = vmatprep.mubr.bf16.mxu0 0
        %1206 = vmatmul.mubr.bf16.gmra.mrb[0].mxu0 %v1168
        %v1207 = vpop.f32.mrb[0].mxu0
        %v1208 = vadd.f32 0.0, %v1207
        %v1209 = vpop.f32.mrb[0].mxu0
        %v1210 = vpop.f32.mrb[0].mxu0
        %v1211 = vpop.f32.mrb[0].mxu0
        %1212 = vdwg.mxu0
        %v1213 = vpack.c.bf16 %v1208, %v1160
        %1214 = vst.msk [vmem:[#allocation2] sm:$0xff] %vm996, %v1213
        %1215 = vrot.lane.b32.xlu0 %v979, 120
        %v1216 = vpop.permute.xlu0 %1215
        %1217 = vrot.lane.b32.xlu0 %v979, 88
        %v1218 = vpop.permute.xlu0 %1217
        %v1220 = vsel %vm996, %v1216, 0
        %v1223 = vsel %vm996, %v1218, 0
        %1225 = vmatprep.subr.bf16.mxu0 0
        %1226 = vmatpush1.bf16.xpose.msra.mxu0 %v1223
        %1227 = vmatprep.subr.bf16.mxu0 0
        %1228 = vmatpush1.bf16.xpose.msra.mxu0 0
        %1229 = vmatprep.subr.bf16.mxu0 0
        %1230 = vmatpush1.bf16.xpose.msra.mxu0 0
        %1231 = vmatprep.subr.bf16.mxu0 0
        %1232 = vmatpush1.bf16.xpose.msra.mxu0 0
        %1233 = vmatprep.subr.bf16.mxu0 0
        %1234 = vmatpush1.bf16.xpose.msra.mxu0 0
        %1235 = vmatprep.subr.bf16.mxu0 0
        %1236 = vmatpush1.bf16.xpose.msra.mxu0 0
        %1237 = vmatprep.subr.bf16.mxu0 0
        %1238 = vmatpush1.bf16.xpose.msra.mxu0 0
        %1239 = vmatprep.subr.bf16.mxu0 0
        %1240 = vmatpush1.bf16.xpose.msra.mxu0 0
        %1241 = vmatprep.subr.bf16.mxu0 0
        %1242 = vmatpush1.bf16.xpose.msra.mxu0 0
        %1243 = vmatprep.subr.bf16.mxu0 0
        %1244 = vmatpush1.bf16.xpose.msra.mxu0 0
        %1245 = vmatprep.subr.bf16.mxu0 0
        %1246 = vmatpush1.bf16.xpose.msra.mxu0 0
        %1247 = vmatprep.subr.bf16.mxu0 0
        %1248 = vmatpush1.bf16.xpose.msra.mxu0 0
        %1249 = vmatprep.subr.bf16.mxu0 0
        %1250 = vmatpush1.bf16.xpose.msra.mxu0 0
        %1251 = vmatprep.subr.bf16.mxu0 0
        %1252 = vmatpush1.bf16.xpose.msra.mxu0 0
        %1253 = vmatprep.subr.bf16.mxu0 0
        %1254 = vmatpush1.bf16.xpose.msra.mxu0 0
        %1255 = vmatprep.subr.bf16.mxu0 0
        %1256 = vmatpush1.bf16.xpose.msra.mxu0 0
        %1257 = vmatprep.mubr.bf16.mxu0 0
        %1258 = vmatmul.mubr.bf16.gmra.mrb[0].mxu0 %v1220
        %v1259 = vpop.f32.mrb[0].mxu0
        %v1260 = vadd.f32 %v986, %v1259
        %v1261 = vpop.f32.mrb[0].mxu0
        %v1262 = vpop.f32.mrb[0].mxu0
        %v1263 = vpop.f32.mrb[0].mxu0
        %1264 = vdwg.mxu0
        %1265 = vrot.lane.b32.xlu0 %v980, 120
        %v1266 = vpop.permute.xlu0 %1265
        %1267 = vrot.lane.b32.xlu0 %v980, 88
        %v1268 = vpop.permute.xlu0 %1267
        %v1270 = vsel %vm996, %v1266, 0
        %v1273 = vsel %vm996, %v1268, 0
        %1275 = vmatprep.subr.bf16.mxu0 0
        %1276 = vmatpush1.bf16.xpose.msra.mxu0 %v1273
        %1277 = vmatprep.subr.bf16.mxu0 0
        %1278 = vmatpush1.bf16.xpose.msra.mxu0 0
        %1279 = vmatprep.subr.bf16.mxu0 0
        %1280 = vmatpush1.bf16.xpose.msra.mxu0 0
        %1281 = vmatprep.subr.bf16.mxu0 0
        %1282 = vmatpush1.bf16.xpose.msra.mxu0 0
        %1283 = vmatprep.subr.bf16.mxu0 0
        %1284 = vmatpush1.bf16.xpose.msra.mxu0 0
        %1285 = vmatprep.subr.bf16.mxu0 0
        %1286 = vmatpush1.bf16.xpose.msra.mxu0 0
        %1287 = vmatprep.subr.bf16.mxu0 0
        %1288 = vmatpush1.bf16.xpose.msra.mxu0 0
        %1289 = vmatprep.subr.bf16.mxu0 0
        %1290 = vmatpush1.bf16.xpose.msra.mxu0 0
        %1291 = vmatprep.subr.bf16.mxu0 0
        %1292 = vmatpush1.bf16.xpose.msra.mxu0 0
        %1293 = vmatprep.subr.bf16.mxu0 0
        %1294 = vmatpush1.bf16.xpose.msra.mxu0 0
        %1295 = vmatprep.subr.bf16.mxu0 0
        %1296 = vmatpush1.bf16.xpose.msra.mxu0 0
        %1297 = vmatprep.subr.bf16.mxu0 0
        %1298 = vmatpush1.bf16.xpose.msra.mxu0 0
        %1299 = vmatprep.subr.bf16.mxu0 0
        %1300 = vmatpush1.bf16.xpose.msra.mxu0 0
        %1301 = vmatprep.subr.bf16.mxu0 0
        %1302 = vmatpush1.bf16.xpose.msra.mxu0 0
        %1303 = vmatprep.subr.bf16.mxu0 0
        %1304 = vmatpush1.bf16.xpose.msra.mxu0 0
        %1305 = vmatprep.subr.bf16.mxu0 0
        %1306 = vmatpush1.bf16.xpose.msra.mxu0 0
        %1307 = vmatprep.mubr.bf16.mxu0 0
        %1308 = vmatmul.mubr.bf16.gmra.mrb[0].mxu0 %v1270
        %v1309 = vpop.f32.mrb[0].mxu0
        %v1310 = vadd.f32 %v990, %v1309
        %v1311 = vpop.f32.mrb[0].mxu0
        %v1312 = vpop.f32.mrb[0].mxu0
        %v1313 = vpop.f32.mrb[0].mxu0
        %1314 = vdwg.mxu0
        %v1315 = vsel %vm996, %v1260, -inf
        %1316 = vmax.xlane.f32.xlu0 %v1315
        %v1317 = vpop.xlane.xlu0 %1316
        %v1318 = vsel %vm996, %v1310, -inf
        %1319 = vmax.xlane.f32.xlu0 %v1318
        %v1320 = vpop.xlane.xlu0 %1319
        %v1321 = vsub.f32 %v1260, %v1317
        %v1322 = vsub.f32 %v1310, %v1320
        %v1323 = vmul.f32 %v1321, 1.442695
        %v1324 = vpow.pop %v1323
        %v1325 = vmul.f32 %v1322, 1.442695
        %v1326 = vpow.pop %v1325
        %v1327 = vsel %vm996, %v1324, 0.0
        %1328 = vadd.xlane.f32.xlu0 %v1327
        %v1329 = vpop.xlane.xlu0 %1328
        %v1330 = vsel %vm996, %v1326, 0.0
        %1331 = vadd.xlane.f32.xlu0 %v1330
        %v1332 = vpop.xlane.xlu0 %1331
        %v1333 = vrcp.pop %v1329
        %v1334 = vrcp.pop %v1332
        %v1335 = vmul.f32 %v1324, %v1333
        %v1336 = vmul.f32 %v1326, %v1334
        %v1337 = vpack.c.bf16 %v1335, %v1335
        %v1338 = vpack.c.bf16 %v1336, %v1336
        %1339 = vrot.lane.b32.xlu0 %v979, 56
        %v1340 = vpop.permute.xlu0 %1339
        %v1342 = vsel %vm996, %v1337, 0
        %v1345 = vsel %vm1121, %v1340, 0
        %1347 = vmatprep.subr.bf16.mxu0 0
        %1348 = vmatpush1.bf16.msra.mxu0 %v1345
        %1349 = vmatprep.subr.bf16.mxu0 0
        %1350 = vmatpush1.bf16.msra.mxu0 0
        %1351 = vmatprep.subr.bf16.mxu0 0
        %1352 = vmatpush1.bf16.msra.mxu0 0
        %1353 = vmatprep.subr.bf16.mxu0 0
        %1354 = vmatpush1.bf16.msra.mxu0 0
        %1355 = vmatprep.subr.bf16.mxu0 0
        %1356 = vmatpush1.bf16.msra.mxu0 0
        %1357 = vmatprep.subr.bf16.mxu0 0
        %1358 = vmatpush1.bf16.msra.mxu0 0
        %1359 = vmatprep.subr.bf16.mxu0 0
        %1360 = vmatpush1.bf16.msra.mxu0 0
        %1361 = vmatprep.subr.bf16.mxu0 0
        %1362 = vmatpush1.bf16.msra.mxu0 0
        %1363 = vmatprep.subr.bf16.mxu0 0
        %1364 = vmatpush1.bf16.msra.mxu0 0
        %1365 = vmatprep.subr.bf16.mxu0 0
        %1366 = vmatpush1.bf16.msra.mxu0 0
        %1367 = vmatprep.subr.bf16.mxu0 0
        %1368 = vmatpush1.bf16.msra.mxu0 0
        %1369 = vmatprep.subr.bf16.mxu0 0
        %1370 = vmatpush1.bf16.msra.mxu0 0
        %1371 = vmatprep.subr.bf16.mxu0 0
        %1372 = vmatpush1.bf16.msra.mxu0 0
        %1373 = vmatprep.subr.bf16.mxu0 0
        %1374 = vmatpush1.bf16.msra.mxu0 0
        %1375 = vmatprep.subr.bf16.mxu0 0
        %1376 = vmatpush1.bf16.msra.mxu0 0
        %1377 = vmatprep.subr.bf16.mxu0 0
        %1378 = vmatpush1.bf16.msra.mxu0 0
        %1379 = vmatprep.mubr.bf16.mxu0 0
        %1380 = vmatmul.mubr.bf16.gmra.mrb[0].mxu0 %v1342
        %v1381 = vpop.f32.mrb[0].mxu0
        %v1382 = vadd.f32 0.0, %v1381
        %v1383 = vpop.f32.mrb[0].mxu0
        %v1384 = vpop.f32.mrb[0].mxu0
        %v1385 = vpop.f32.mrb[0].mxu0
        %1386 = vdwg.mxu0
        %1387 = vrot.lane.b32.xlu0 %v980, 56
        %v1388 = vpop.permute.xlu0 %1387
        %v1390 = vsel %vm996, %v1338, 0
        %v1393 = vsel %vm1121, %v1388, 0
        %1395 = vmatprep.subr.bf16.mxu0 0
        %1396 = vmatpush1.bf16.msra.mxu0 %v1393
        %1397 = vmatprep.subr.bf16.mxu0 0
        %1398 = vmatpush1.bf16.msra.mxu0 0
        %1399 = vmatprep.subr.bf16.mxu0 0
        %1400 = vmatpush1.bf16.msra.mxu0 0
        %1401 = vmatprep.subr.bf16.mxu0 0
        %1402 = vmatpush1.bf16.msra.mxu0 0
        %1403 = vmatprep.subr.bf16.mxu0 0
        %1404 = vmatpush1.bf16.msra.mxu0 0
        %1405 = vmatprep.subr.bf16.mxu0 0
        %1406 = vmatpush1.bf16.msra.mxu0 0
        %1407 = vmatprep.subr.bf16.mxu0 0
        %1408 = vmatpush1.bf16.msra.mxu0 0
        %1409 = vmatprep.subr.bf16.mxu0 0
        %1410 = vmatpush1.bf16.msra.mxu0 0
        %1411 = vmatprep.subr.bf16.mxu0 0
        %1412 = vmatpush1.bf16.msra.mxu0 0
        %1413 = vmatprep.subr.bf16.mxu0 0
        %1414 = vmatpush1.bf16.msra.mxu0 0
        %1415 = vmatprep.subr.bf16.mxu0 0
        %1416 = vmatpush1.bf16.msra.mxu0 0
        %1417 = vmatprep.subr.bf16.mxu0 0
        %1418 = vmatpush1.bf16.msra.mxu0 0
        %1419 = vmatprep.subr.bf16.mxu0 0
        %1420 = vmatpush1.bf16.msra.mxu0 0
        %1421 = vmatprep.subr.bf16.mxu0 0
        %1422 = vmatpush1.bf16.msra.mxu0 0
        %1423 = vmatprep.subr.bf16.mxu0 0
        %1424 = vmatpush1.bf16.msra.mxu0 0
        %1425 = vmatprep.subr.bf16.mxu0 0
        %1426 = vmatpush1.bf16.msra.mxu0 0
        %1427 = vmatprep.mubr.bf16.mxu0 0
        %1428 = vmatmul.mubr.bf16.gmra.mrb[0].mxu0 %v1390
        %v1429 = vpop.f32.mrb[0].mxu0
        %v1430 = vadd.f32 0.0, %v1429
        %v1431 = vpop.f32.mrb[0].mxu0
        %v1432 = vpop.f32.mrb[0].mxu0
        %v1433 = vpop.f32.mrb[0].mxu0
        %1434 = vdwg.mxu0
        %v1435 = vpack.c.bf16 %v1430, %v1382
        %1437 = vrot.lane.b32.xlu0 %v1435, 8
        %v1438 = vpop.permute.xlu0 %1437
        %vm1440 = vcmask 130112
        %1441 = vst.msk [vmem:[#allocation2] sm:$0xff] %vm1440, %v1438
        %1442 = vrot.lane.b32.xlu0 %v979, 112
        %v1443 = vpop.permute.xlu0 %1442
        %1444 = vrot.lane.b32.xlu0 %v979, 80
        %v1445 = vpop.permute.xlu0 %1444
        %v1447 = vsel %vm996, %v1443, 0
        %v1450 = vsel %vm996, %v1445, 0
        %1452 = vmatprep.subr.bf16.mxu0 0
        %1453 = vmatpush1.bf16.xpose.msra.mxu0 %v1450
        %1454 = vmatprep.subr.bf16.mxu0 0
        %1455 = vmatpush1.bf16.xpose.msra.mxu0 0
        %1456 = vmatprep.subr.bf16.mxu0 0
        %1457 = vmatpush1.bf16.xpose.msra.mxu0 0
        %1458 = vmatprep.subr.bf16.mxu0 0
        %1459 = vmatpush1.bf16.xpose.msra.mxu0 0
        %1460 = vmatprep.subr.bf16.mxu0 0
        %1461 = vmatpush1.bf16.xpose.msra.mxu0 0
        %1462 = vmatprep.subr.bf16.mxu0 0
        %1463 = vmatpush1.bf16.xpose.msra.mxu0 0
        %1464 = vmatprep.subr.bf16.mxu0 0
        %1465 = vmatpush1.bf16.xpose.msra.mxu0 0
        %1466 = vmatprep.subr.bf16.mxu0 0
        %1467 = vmatpush1.bf16.xpose.msra.mxu0 0
        %1468 = vmatprep.subr.bf16.mxu0 0
        %1469 = vmatpush1.bf16.xpose.msra.mxu0 0
        %1470 = vmatprep.subr.bf16.mxu0 0
        %1471 = vmatpush1.bf16.xpose.msra.mxu0 0
        %1472 = vmatprep.subr.bf16.mxu0 0
        %1473 = vmatpush1.bf16.xpose.msra.mxu0 0
        %1474 = vmatprep.subr.bf16.mxu0 0
        %1475 = vmatpush1.bf16.xpose.msra.mxu0 0
        %1476 = vmatprep.subr.bf16.mxu0 0
        %1477 = vmatpush1.bf16.xpose.msra.mxu0 0
        %1478 = vmatprep.subr.bf16.mxu0 0
        %1479 = vmatpush1.bf16.xpose.msra.mxu0 0
        %1480 = vmatprep.subr.bf16.mxu0 0
        %1481 = vmatpush1.bf16.xpose.msra.mxu0 0
        %1482 = vmatprep.subr.bf16.mxu0 0
        %1483 = vmatpush1.bf16.xpose.msra.mxu0 0
        %1484 = vmatprep.mubr.bf16.mxu0 0
        %1485 = vmatmul.mubr.bf16.gmra.mrb[0].mxu0 %v1447
        %v1486 = vpop.f32.mrb[0].mxu0
        %v1487 = vadd.f32 %v986, %v1486
        %v1488 = vpop.f32.mrb[0].mxu0
        %v1489 = vpop.f32.mrb[0].mxu0
        %v1490 = vpop.f32.mrb[0].mxu0
        %1491 = vdwg.mxu0
        %1492 = vrot.lane.b32.xlu0 %v980, 112
        %v1493 = vpop.permute.xlu0 %1492
        %1494 = vrot.lane.b32.xlu0 %v980, 80
        %v1495 = vpop.permute.xlu0 %1494
        %v1497 = vsel %vm996, %v1493, 0
        %v1500 = vsel %vm996, %v1495, 0
        %1502 = vmatprep.subr.bf16.mxu0 0
        %1503 = vmatpush1.bf16.xpose.msra.mxu0 %v1500
        %1504 = vmatprep.subr.bf16.mxu0 0
        %1505 = vmatpush1.bf16.xpose.msra.mxu0 0
        %1506 = vmatprep.subr.bf16.mxu0 0
        %1507 = vmatpush1.bf16.xpose.msra.mxu0 0
        %1508 = vmatprep.subr.bf16.mxu0 0
        %1509 = vmatpush1.bf16.xpose.msra.mxu0 0
        %1510 = vmatprep.subr.bf16.mxu0 0
        %1511 = vmatpush1.bf16.xpose.msra.mxu0 0
        %1512 = vmatprep.subr.bf16.mxu0 0
        %1513 = vmatpush1.bf16.xpose.msra.mxu0 0
        %1514 = vmatprep.subr.bf16.mxu0 0
        %1515 = vmatpush1.bf16.xpose.msra.mxu0 0
        %1516 = vmatprep.subr.bf16.mxu0 0
        %1517 = vmatpush1.bf16.xpose.msra.mxu0 0
        %1518 = vmatprep.subr.bf16.mxu0 0
        %1519 = vmatpush1.bf16.xpose.msra.mxu0 0
        %1520 = vmatprep.subr.bf16.mxu0 0
        %1521 = vmatpush1.bf16.xpose.msra.mxu0 0
        %1522 = vmatprep.subr.bf16.mxu0 0
        %1523 = vmatpush1.bf16.xpose.msra.mxu0 0
        %1524 = vmatprep.subr.bf16.mxu0 0
        %1525 = vmatpush1.bf16.xpose.msra.mxu0 0
        %1526 = vmatprep.subr.bf16.mxu0 0
        %1527 = vmatpush1.bf16.xpose.msra.mxu0 0
        %1528 = vmatprep.subr.bf16.mxu0 0
        %1529 = vmatpush1.bf16.xpose.msra.mxu0 0
        %1530 = vmatprep.subr.bf16.mxu0 0
        %1531 = vmatpush1.bf16.xpose.msra.mxu0 0
        %1532 = vmatprep.subr.bf16.mxu0 0
        %1533 = vmatpush1.bf16.xpose.msra.mxu0 0
        %1534 = vmatprep.mubr.bf16.mxu0 0
        %1535 = vmatmul.mubr.bf16.gmra.mrb[0].mxu0 %v1497
        %v1536 = vpop.f32.mrb[0].mxu0
        %v1537 = vadd.f32 %v990, %v1536
        %v1538 = vpop.f32.mrb[0].mxu0
        %v1539 = vpop.f32.mrb[0].mxu0
        %v1540 = vpop.f32.mrb[0].mxu0
        %1541 = vdwg.mxu0
        %v1542 = vsel %vm996, %v1487, -inf
        %1543 = vmax.xlane.f32.xlu0 %v1542
        %v1544 = vpop.xlane.xlu0 %1543
        %v1545 = vsel %vm996, %v1537, -inf
        %1546 = vmax.xlane.f32.xlu0 %v1545
        %v1547 = vpop.xlane.xlu0 %1546
        %v1548 = vsub.f32 %v1487, %v1544
        %v1549 = vsub.f32 %v1537, %v1547
        %v1550 = vmul.f32 %v1548, 1.442695
        %v1551 = vpow.pop %v1550
        %v1552 = vmul.f32 %v1549, 1.442695
        %v1553 = vpow.pop %v1552
        %v1554 = vsel %vm996, %v1551, 0.0
        %1555 = vadd.xlane.f32.xlu0 %v1554
        %v1556 = vpop.xlane.xlu0 %1555
        %v1557 = vsel %vm996, %v1553, 0.0
        %1558 = vadd.xlane.f32.xlu0 %v1557
        %v1559 = vpop.xlane.xlu0 %1558
        %v1560 = vrcp.pop %v1556
        %v1561 = vrcp.pop %v1559
        %v1562 = vmul.f32 %v1551, %v1560
        %v1563 = vmul.f32 %v1553, %v1561
        %v1564 = vpack.c.bf16 %v1562, %v1562
        %v1565 = vpack.c.bf16 %v1563, %v1563
        %1566 = vrot.lane.b32.xlu0 %v979, 48
        %v1567 = vpop.permute.xlu0 %1566
        %v1569 = vsel %vm996, %v1564, 0
        %v1572 = vsel %vm1121, %v1567, 0
        %1574 = vmatprep.subr.bf16.mxu0 0
        %1575 = vmatpush1.bf16.msra.mxu0 %v1572
        %1576 = vmatprep.subr.bf16.mxu0 0
        %1577 = vmatpush1.bf16.msra.mxu0 0
        %1578 = vmatprep.subr.bf16.mxu0 0
        %1579 = vmatpush1.bf16.msra.mxu0 0
        %1580 = vmatprep.subr.bf16.mxu0 0
        %1581 = vmatpush1.bf16.msra.mxu0 0
        %1582 = vmatprep.subr.bf16.mxu0 0
        %1583 = vmatpush1.bf16.msra.mxu0 0
        %1584 = vmatprep.subr.bf16.mxu0 0
        %1585 = vmatpush1.bf16.msra.mxu0 0
        %1586 = vmatprep.subr.bf16.mxu0 0
        %1587 = vmatpush1.bf16.msra.mxu0 0
        %1588 = vmatprep.subr.bf16.mxu0 0
        %1589 = vmatpush1.bf16.msra.mxu0 0
        %1590 = vmatprep.subr.bf16.mxu0 0
        %1591 = vmatpush1.bf16.msra.mxu0 0
        %1592 = vmatprep.subr.bf16.mxu0 0
        %1593 = vmatpush1.bf16.msra.mxu0 0
        %1594 = vmatprep.subr.bf16.mxu0 0
        %1595 = vmatpush1.bf16.msra.mxu0 0
        %1596 = vmatprep.subr.bf16.mxu0 0
        %1597 = vmatpush1.bf16.msra.mxu0 0
        %1598 = vmatprep.subr.bf16.mxu0 0
        %1599 = vmatpush1.bf16.msra.mxu0 0
        %1600 = vmatprep.subr.bf16.mxu0 0
        %1601 = vmatpush1.bf16.msra.mxu0 0
        %1602 = vmatprep.subr.bf16.mxu0 0
        %1603 = vmatpush1.bf16.msra.mxu0 0
        %1604 = vmatprep.subr.bf16.mxu0 0
        %1605 = vmatpush1.bf16.msra.mxu0 0
        %1606 = vmatprep.mubr.bf16.mxu0 0
        %1607 = vmatmul.mubr.bf16.gmra.mrb[0].mxu0 %v1569
        %v1608 = vpop.f32.mrb[0].mxu0
        %v1609 = vadd.f32 0.0, %v1608
        %v1610 = vpop.f32.mrb[0].mxu0
        %v1611 = vpop.f32.mrb[0].mxu0
        %v1612 = vpop.f32.mrb[0].mxu0
        %1613 = vdwg.mxu0
        %1614 = vrot.lane.b32.xlu0 %v980, 48
        %v1615 = vpop.permute.xlu0 %1614
        %v1617 = vsel %vm996, %v1565, 0
        %v1620 = vsel %vm1121, %v1615, 0
        %1622 = vmatprep.subr.bf16.mxu0 0
        %1623 = vmatpush1.bf16.msra.mxu0 %v1620
        %1624 = vmatprep.subr.bf16.mxu0 0
        %1625 = vmatpush1.bf16.msra.mxu0 0
        %1626 = vmatprep.subr.bf16.mxu0 0
        %1627 = vmatpush1.bf16.msra.mxu0 0
        %1628 = vmatprep.subr.bf16.mxu0 0
        %1629 = vmatpush1.bf16.msra.mxu0 0
        %1630 = vmatprep.subr.bf16.mxu0 0
        %1631 = vmatpush1.bf16.msra.mxu0 0
        %1632 = vmatprep.subr.bf16.mxu0 0
        %1633 = vmatpush1.bf16.msra.mxu0 0
        %1634 = vmatprep.subr.bf16.mxu0 0
        %1635 = vmatpush1.bf16.msra.mxu0 0
        %1636 = vmatprep.subr.bf16.mxu0 0
        %1637 = vmatpush1.bf16.msra.mxu0 0
        %1638 = vmatprep.subr.bf16.mxu0 0
        %1639 = vmatpush1.bf16.msra.mxu0 0
        %1640 = vmatprep.subr.bf16.mxu0 0
        %1641 = vmatpush1.bf16.msra.mxu0 0
        %1642 = vmatprep.subr.bf16.mxu0 0
        %1643 = vmatpush1.bf16.msra.mxu0 0
        %1644 = vmatprep.subr.bf16.mxu0 0
        %1645 = vmatpush1.bf16.msra.mxu0 0
        %1646 = vmatprep.subr.bf16.mxu0 0
        %1647 = vmatpush1.bf16.msra.mxu0 0
        %1648 = vmatprep.subr.bf16.mxu0 0
        %1649 = vmatpush1.bf16.msra.mxu0 0
        %1650 = vmatprep.subr.bf16.mxu0 0
        %1651 = vmatpush1.bf16.msra.mxu0 0
        %1652 = vmatprep.subr.bf16.mxu0 0
        %1653 = vmatpush1.bf16.msra.mxu0 0
        %1654 = vmatprep.mubr.bf16.mxu0 0
        %1655 = vmatmul.mubr.bf16.gmra.mrb[0].mxu0 %v1617
        %v1656 = vpop.f32.mrb[0].mxu0
        %v1657 = vadd.f32 0.0, %v1656
        %v1658 = vpop.f32.mrb[0].mxu0
        %v1659 = vpop.f32.mrb[0].mxu0
        %v1660 = vpop.f32.mrb[0].mxu0
        %1661 = vdwg.mxu0
        %v1662 = vpack.c.bf16 %v1657, %v1609
        %1664 = vrot.lane.b32.xlu0 %v1662, 16
        %v1665 = vpop.permute.xlu0 %1664
        %vm1667 = vcmask 195712
        %1668 = vst.msk [vmem:[#allocation2] sm:$0xff] %vm1667, %v1665
        %1669 = vrot.lane.b32.xlu0 %v979, 104
        %v1670 = vpop.permute.xlu0 %1669
        %1671 = vrot.lane.b32.xlu0 %v979, 72
        %v1672 = vpop.permute.xlu0 %1671
        %v1674 = vsel %vm996, %v1670, 0
        %v1677 = vsel %vm996, %v1672, 0
        %1679 = vmatprep.subr.bf16.mxu0 0
        %1680 = vmatpush1.bf16.xpose.msra.mxu0 %v1677
        %1681 = vmatprep.subr.bf16.mxu0 0
        %1682 = vmatpush1.bf16.xpose.msra.mxu0 0
        %1683 = vmatprep.subr.bf16.mxu0 0
        %1684 = vmatpush1.bf16.xpose.msra.mxu0 0
        %1685 = vmatprep.subr.bf16.mxu0 0
        %1686 = vmatpush1.bf16.xpose.msra.mxu0 0
        %1687 = vmatprep.subr.bf16.mxu0 0
        %1688 = vmatpush1.bf16.xpose.msra.mxu0 0
        %1689 = vmatprep.subr.bf16.mxu0 0
        %1690 = vmatpush1.bf16.xpose.msra.mxu0 0
        %1691 = vmatprep.subr.bf16.mxu0 0
        %1692 = vmatpush1.bf16.xpose.msra.mxu0 0
        %1693 = vmatprep.subr.bf16.mxu0 0
        %1694 = vmatpush1.bf16.xpose.msra.mxu0 0
        %1695 = vmatprep.subr.bf16.mxu0 0
        %1696 = vmatpush1.bf16.xpose.msra.mxu0 0
        %1697 = vmatprep.subr.bf16.mxu0 0
        %1698 = vmatpush1.bf16.xpose.msra.mxu0 0
        %1699 = vmatprep.subr.bf16.mxu0 0
        %1700 = vmatpush1.bf16.xpose.msra.mxu0 0
        %1701 = vmatprep.subr.bf16.mxu0 0
        %1702 = vmatpush1.bf16.xpose.msra.mxu0 0
        %1703 = vmatprep.subr.bf16.mxu0 0
        %1704 = vmatpush1.bf16.xpose.msra.mxu0 0
        %1705 = vmatprep.subr.bf16.mxu0 0
        %1706 = vmatpush1.bf16.xpose.msra.mxu0 0
        %1707 = vmatprep.subr.bf16.mxu0 0
        %1708 = vmatpush1.bf16.xpose.msra.mxu0 0
        %1709 = vmatprep.subr.bf16.mxu0 0
        %1710 = vmatpush1.bf16.xpose.msra.mxu0 0
        %1711 = vmatprep.mubr.bf16.mxu0 0
        %1712 = vmatmul.mubr.bf16.gmra.mrb[0].mxu0 %v1674
        %v1713 = vpop.f32.mrb[0].mxu0
        %v1714 = vadd.f32 %v986, %v1713
        %v1715 = vpop.f32.mrb[0].mxu0
        %v1716 = vpop.f32.mrb[0].mxu0
        %v1717 = vpop.f32.mrb[0].mxu0
        %1718 = vdwg.mxu0
        %1719 = vrot.lane.b32.xlu0 %v980, 104
        %v1720 = vpop.permute.xlu0 %1719
        %1721 = vrot.lane.b32.xlu0 %v980, 72
        %v1722 = vpop.permute.xlu0 %1721
        %v1724 = vsel %vm996, %v1720, 0
        %v1727 = vsel %vm996, %v1722, 0
        %1729 = vmatprep.subr.bf16.mxu0 0
        %1730 = vmatpush1.bf16.xpose.msra.mxu0 %v1727
        %1731 = vmatprep.subr.bf16.mxu0 0
        %1732 = vmatpush1.bf16.xpose.msra.mxu0 0
        %1733 = vmatprep.subr.bf16.mxu0 0
        %1734 = vmatpush1.bf16.xpose.msra.mxu0 0
        %1735 = vmatprep.subr.bf16.mxu0 0
        %1736 = vmatpush1.bf16.xpose.msra.mxu0 0
        %1737 = vmatprep.subr.bf16.mxu0 0
        %1738 = vmatpush1.bf16.xpose.msra.mxu0 0
        %1739 = vmatprep.subr.bf16.mxu0 0
        %1740 = vmatpush1.bf16.xpose.msra.mxu0 0
        %1741 = vmatprep.subr.bf16.mxu0 0
        %1742 = vmatpush1.bf16.xpose.msra.mxu0 0
        %1743 = vmatprep.subr.bf16.mxu0 0
        %1744 = vmatpush1.bf16.xpose.msra.mxu0 0
        %1745 = vmatprep.subr.bf16.mxu0 0
        %1746 = vmatpush1.bf16.xpose.msra.mxu0 0
        %1747 = vmatprep.subr.bf16.mxu0 0
        %1748 = vmatpush1.bf16.xpose.msra.mxu0 0
        %1749 = vmatprep.subr.bf16.mxu0 0
        %1750 = vmatpush1.bf16.xpose.msra.mxu0 0
        %1751 = vmatprep.subr.bf16.mxu0 0
        %1752 = vmatpush1.bf16.xpose.msra.mxu0 0
        %1753 = vmatprep.subr.bf16.mxu0 0
        %1754 = vmatpush1.bf16.xpose.msra.mxu0 0
        %1755 = vmatprep.subr.bf16.mxu0 0
        %1756 = vmatpush1.bf16.xpose.msra.mxu0 0
        %1757 = vmatprep.subr.bf16.mxu0 0
        %1758 = vmatpush1.bf16.xpose.msra.mxu0 0
        %1759 = vmatprep.subr.bf16.mxu0 0
        %1760 = vmatpush1.bf16.xpose.msra.mxu0 0
        %1761 = vmatprep.mubr.bf16.mxu0 0
        %1762 = vmatmul.mubr.bf16.gmra.mrb[0].mxu0 %v1724
        %v1763 = vpop.f32.mrb[0].mxu0
        %v1764 = vadd.f32 %v990, %v1763
        %v1765 = vpop.f32.mrb[0].mxu0
        %v1766 = vpop.f32.mrb[0].mxu0
        %v1767 = vpop.f32.mrb[0].mxu0
        %1768 = vdwg.mxu0
        %v1769 = vsel %vm996, %v1714, -inf
        %1770 = vmax.xlane.f32.xlu0 %v1769
        %v1771 = vpop.xlane.xlu0 %1770
        %v1772 = vsel %vm996, %v1764, -inf
        %1773 = vmax.xlane.f32.xlu0 %v1772
        %v1774 = vpop.xlane.xlu0 %1773
        %v1775 = vsub.f32 %v1714, %v1771
        %v1776 = vsub.f32 %v1764, %v1774
        %v1777 = vmul.f32 %v1775, 1.442695
        %v1778 = vpow.pop %v1777
        %v1779 = vmul.f32 %v1776, 1.442695
        %v1780 = vpow.pop %v1779
        %v1781 = vsel %vm996, %v1778, 0.0
        %1782 = vadd.xlane.f32.xlu0 %v1781
        %v1783 = vpop.xlane.xlu0 %1782
        %v1784 = vsel %vm996, %v1780, 0.0
        %1785 = vadd.xlane.f32.xlu0 %v1784
        %v1786 = vpop.xlane.xlu0 %1785
        %v1787 = vrcp.pop %v1783
        %v1788 = vrcp.pop %v1786
        %v1789 = vmul.f32 %v1778, %v1787
        %v1790 = vmul.f32 %v1780, %v1788
        %v1791 = vpack.c.bf16 %v1789, %v1789
        %v1792 = vpack.c.bf16 %v1790, %v1790
        %1793 = vrot.lane.b32.xlu0 %v979, 40
        %v1794 = vpop.permute.xlu0 %1793
        %v1796 = vsel %vm996, %v1791, 0
        %v1799 = vsel %vm1121, %v1794, 0
        %1801 = vmatprep.subr.bf16.mxu0 0
        %1802 = vmatpush1.bf16.msra.mxu0 %v1799
        %1803 = vmatprep.subr.bf16.mxu0 0
        %1804 = vmatpush1.bf16.msra.mxu0 0
        %1805 = vmatprep.subr.bf16.mxu0 0
        %1806 = vmatpush1.bf16.msra.mxu0 0
        %1807 = vmatprep.subr.bf16.mxu0 0
        %1808 = vmatpush1.bf16.msra.mxu0 0
        %1809 = vmatprep.subr.bf16.mxu0 0
        %1810 = vmatpush1.bf16.msra.mxu0 0
        %1811 = vmatprep.subr.bf16.mxu0 0
        %1812 = vmatpush1.bf16.msra.mxu0 0
        %1813 = vmatprep.subr.bf16.mxu0 0
        %1814 = vmatpush1.bf16.msra.mxu0 0
        %1815 = vmatprep.subr.bf16.mxu0 0
        %1816 = vmatpush1.bf16.msra.mxu0 0
        %1817 = vmatprep.subr.bf16.mxu0 0
        %1818 = vmatpush1.bf16.msra.mxu0 0
        %1819 = vmatprep.subr.bf16.mxu0 0
        %1820 = vmatpush1.bf16.msra.mxu0 0
        %1821 = vmatprep.subr.bf16.mxu0 0
        %1822 = vmatpush1.bf16.msra.mxu0 0
        %1823 = vmatprep.subr.bf16.mxu0 0
        %1824 = vmatpush1.bf16.msra.mxu0 0
        %1825 = vmatprep.subr.bf16.mxu0 0
        %1826 = vmatpush1.bf16.msra.mxu0 0
        %1827 = vmatprep.subr.bf16.mxu0 0
        %1828 = vmatpush1.bf16.msra.mxu0 0
        %1829 = vmatprep.subr.bf16.mxu0 0
        %1830 = vmatpush1.bf16.msra.mxu0 0
        %1831 = vmatprep.subr.bf16.mxu0 0
        %1832 = vmatpush1.bf16.msra.mxu0 0
        %1833 = vmatprep.mubr.bf16.mxu0 0
        %1834 = vmatmul.mubr.bf16.gmra.mrb[0].mxu0 %v1796
        %v1835 = vpop.f32.mrb[0].mxu0
        %v1836 = vadd.f32 0.0, %v1835
        %v1837 = vpop.f32.mrb[0].mxu0
        %v1838 = vpop.f32.mrb[0].mxu0
        %v1839 = vpop.f32.mrb[0].mxu0
        %1840 = vdwg.mxu0
        %1841 = vrot.lane.b32.xlu0 %v980, 40
        %v1842 = vpop.permute.xlu0 %1841
        %v1844 = vsel %vm996, %v1792, 0
        %v1847 = vsel %vm1121, %v1842, 0
        %1849 = vmatprep.subr.bf16.mxu0 0
        %1850 = vmatpush1.bf16.msra.mxu0 %v1847
        %1851 = vmatprep.subr.bf16.mxu0 0
        %1852 = vmatpush1.bf16.msra.mxu0 0
        %1853 = vmatprep.subr.bf16.mxu0 0
        %1854 = vmatpush1.bf16.msra.mxu0 0
        %1855 = vmatprep.subr.bf16.mxu0 0
        %1856 = vmatpush1.bf16.msra.mxu0 0
        %1857 = vmatprep.subr.bf16.mxu0 0
        %1858 = vmatpush1.bf16.msra.mxu0 0
        %1859 = vmatprep.subr.bf16.mxu0 0
        %1860 = vmatpush1.bf16.msra.mxu0 0
        %1861 = vmatprep.subr.bf16.mxu0 0
        %1862 = vmatpush1.bf16.msra.mxu0 0
        %1863 = vmatprep.subr.bf16.mxu0 0
        %1864 = vmatpush1.bf16.msra.mxu0 0
        %1865 = vmatprep.subr.bf16.mxu0 0
        %1866 = vmatpush1.bf16.msra.mxu0 0
        %1867 = vmatprep.subr.bf16.mxu0 0
        %1868 = vmatpush1.bf16.msra.mxu0 0
        %1869 = vmatprep.subr.bf16.mxu0 0
        %1870 = vmatpush1.bf16.msra.mxu0 0
        %1871 = vmatprep.subr.bf16.mxu0 0
        %1872 = vmatpush1.bf16.msra.mxu0 0
        %1873 = vmatprep.subr.bf16.mxu0 0
        %1874 = vmatpush1.bf16.msra.mxu0 0
        %1875 = vmatprep.subr.bf16.mxu0 0
        %1876 = vmatpush1.bf16.msra.mxu0 0
        %1877 = vmatprep.subr.bf16.mxu0 0
        %1878 = vmatpush1.bf16.msra.mxu0 0
        %1879 = vmatprep.subr.bf16.mxu0 0
        %1880 = vmatpush1.bf16.msra.mxu0 0
        %1881 = vmatprep.mubr.bf16.mxu0 0
        %1882 = vmatmul.mubr.bf16.gmra.mrb[0].mxu0 %v1844
        %v1883 = vpop.f32.mrb[0].mxu0
        %v1884 = vadd.f32 0.0, %v1883
        %v1885 = vpop.f32.mrb[0].mxu0
        %v1886 = vpop.f32.mrb[0].mxu0
        %v1887 = vpop.f32.mrb[0].mxu0
        %1888 = vdwg.mxu0
        %v1889 = vpack.c.bf16 %v1884, %v1836
        %1891 = vrot.lane.b32.xlu0 %v1889, 24
        %v1892 = vpop.permute.xlu0 %1891
        %vm1894 = vcmask 261312
        %1895 = vst.msk [vmem:[#allocation2] sm:$0xff] %vm1894, %v1892
        %v1896 = vld [vmem:[#allocation2] sm:$0xff]
        %v1897 = vld [vmem:[%s732] sm:$0xf]
        %v1898 = vld [vmem:[%s732 + $0x4] sm:$0xf]
        %v1899 = vld [vmem:[%s732 + $0x8] sm:$0xf]
        %v1900 = vld [vmem:[%s732 + $0xc] sm:$0xf]
        %v1901 = vld [vmem:[%s740] sm:$0x1]
        %v1903 = vlaneseq
        %v1904 = vshrl.u32 %v1903, 7
        %v1905 = vsub.s32 0, %v1904
        %v1906 = vrot.slane %v1901, %v1905
        %v1912 = vunpack.c.l.b16 %v1897
        %v1913 = vunpack.c.l.b16 %v1898
        %v1914 = vunpack.c.l.b16 %v1899
        %v1915 = vunpack.c.l.b16 %v1900
        %v1916 = vpack.c.b16 %v1913, %v1912
        %v1917 = vpack.c.b16 %v1915, %v1914
        %v1921 = vsel %vm934, %v1896, 0
        %1923 = vmatprep.subr.bf16.mxu0 0
        %1924 = vmatpush1.bf16.msra.mxu0 %v1916
        %1925 = vmatprep.subr.bf16.mxu0 0
        %1926 = vmatpush1.bf16.msra.mxu0 %v1917
        %1927 = vmatprep.subr.bf16.mxu0 0
        %1928 = vmatpush1.bf16.msra.mxu0 0
        %1929 = vmatprep.subr.bf16.mxu0 0
        %1930 = vmatpush1.bf16.msra.mxu0 0
        %1931 = vmatprep.subr.bf16.mxu0 0
        %1932 = vmatpush1.bf16.msra.mxu0 0
        %1933 = vmatprep.subr.bf16.mxu0 0
        %1934 = vmatpush1.bf16.msra.mxu0 0
        %1935 = vmatprep.subr.bf16.mxu0 0
        %1936 = vmatpush1.bf16.msra.mxu0 0
        %1937 = vmatprep.subr.bf16.mxu0 0
        %1938 = vmatpush1.bf16.msra.mxu0 0
        %1939 = vmatprep.subr.bf16.mxu0 0
        %1940 = vmatpush1.bf16.msra.mxu0 0
        %1941 = vmatprep.subr.bf16.mxu0 0
        %1942 = vmatpush1.bf16.msra.mxu0 0
        %1943 = vmatprep.subr.bf16.mxu0 0
        %1944 = vmatpush1.bf16.msra.mxu0 0
        %1945 = vmatprep.subr.bf16.mxu0 0
        %1946 = vmatpush1.bf16.msra.mxu0 0
        %1947 = vmatprep.subr.bf16.mxu0 0
        %1948 = vmatpush1.bf16.msra.mxu0 0
        %1949 = vmatprep.subr.bf16.mxu0 0
        %1950 = vmatpush1.bf16.msra.mxu0 0
        %1951 = vmatprep.subr.bf16.mxu0 0
        %1952 = vmatpush1.bf16.msra.mxu0 0
        %1953 = vmatprep.subr.bf16.mxu0 0
        %1954 = vmatpush1.bf16.msra.mxu0 0
        %1955 = vmatprep.mubr.bf16.mxu0 0
        %1956 = vmatmul.mubr.bf16.gmra.mrb[0].mxu0 %v1921
        %v1957 = vpop.f32.mrb[0].mxu0
        %v1958 = vadd.f32 %v1906, %v1957
        %v1959 = vpop.f32.mrb[0].mxu0
        %v1960 = vpop.f32.mrb[0].mxu0
        %v1961 = vadd.f32 %v1906, %v1960
        %v1962 = vpop.f32.mrb[0].mxu0
        %1963 = vdwg.mxu0
        %v1964 = vadd.f32 %v906, %v1958
        %v1965 = vadd.f32 %v907, %v1961
        %v1966 = vld [vmem:[%s748] sm:$0x1]
        %v1967 = vld [vmem:[%s756] sm:$0x1]
        %v1968 = vsel %vm934, %v1964, 0.0
        %1969 = vadd.xlane.f32.xlu0 %v1968
        %v1970 = vpop.xlane.xlu0 %1969
        %v1971 = vsel %vm934, %v1965, 0.0
        %1972 = vadd.xlane.f32.xlu0 %v1971
        %v1973 = vpop.xlane.xlu0 %1972
        %v1974 = vrcp.pop 32.0
        %v1975 = vmul.f32 %v1970, %v1974
        %v1976 = vmul.f32 %v1973, %v1974
        %v1977 = vsub.f32 %v1964, %v1975
        %v1978 = vsub.f32 %v1965, %v1976
        %v1979 = vmul.f32 %v1977, %v1977
        %v1980 = vmul.f32 %v1978, %v1978
        %v1981 = vsel %vm934, %v1979, 0.0
        %1982 = vadd.xlane.f32.xlu0 %v1981
        %v1983 = vpop.xlane.xlu0 %1982
        %v1984 = vsel %vm934, %v1980, 0.0
        %1985 = vadd.xlane.f32.xlu0 %v1984
        %v1986 = vpop.xlane.xlu0 %1985
        %v1987 = vmul.f32 %v1983, %v1974
        %v1988 = vmul.f32 %v1986, %v1974
        %v1989 = vadd.f32 %v1987, 1e-05
        %v1990 = vadd.f32 %v1988, 1e-05
        %v1991 = vrsqrt.pop %v1989
        %v1992 = vrsqrt.pop %v1990
        %v1993 = vmul.f32 %v1977, %v1991
        %v1994 = vmul.f32 %v1978, %v1992
        %v1996 = vlaneseq
        %v1997 = vshrl.u32 %v1996, 7
        %v1998 = vsub.s32 0, %v1997
        %v1999 = vrot.slane %v1966, %v1998
        %v2001 = vmul.f32 %v1993, %v1999
        %v2002 = vmul.f32 %v1994, %v1999
        %v2004 = vlaneseq
        %v2005 = vshrl.u32 %v2004, 7
        %v2006 = vsub.s32 0, %v2005
        %v2007 = vrot.slane %v1967, %v2006
        %v2009 = vadd.f32 %v2001, %v2007
        %v2010 = vadd.f32 %v2002, %v2007
        %v2011 = vpack.c.bf16 %v2010, %v2009
        %v2012 = vld [vmem:[%s765] sm:$0xf]
        %v2013 = vld [vmem:[%s765 + $0x4] sm:$0xf]
        %v2014 = vld [vmem:[%s765 + $0x8] sm:$0xf]
        %v2015 = vld [vmem:[%s765 + $0xc] sm:$0xf]
        %v2016 = vld [vmem:[%s773] sm:$0x1]
        %v2018 = vlaneseq
        %v2019 = vshrl.u32 %v2018, 7
        %v2020 = vsub.s32 0, %v2019
        %v2021 = vrot.slane %v2016, %v2020
        %v2027 = vunpack.c.l.b16 %v2012
        %v2028 = vunpack.c.l.b16 %v2013
        %v2029 = vunpack.c.l.b16 %v2014
        %v2030 = vunpack.c.l.b16 %v2015
        %v2031 = vpack.c.b16 %v2028, %v2027
        %v2032 = vpack.c.b16 %v2030, %v2029
        %v2036 = vsel %vm934, %v2011, 0
        %2038 = vmatprep.subr.bf16.mxu0 0
        %2039 = vmatpush1.bf16.msra.mxu0 %v2031
        %2040 = vmatprep.subr.bf16.mxu0 0
        %2041 = vmatpush1.bf16.msra.mxu0 %v2032
        %2042 = vmatprep.subr.bf16.mxu0 0
        %2043 = vmatpush1.bf16.msra.mxu0 0
        %2044 = vmatprep.subr.bf16.mxu0 0
        %2045 = vmatpush1.bf16.msra.mxu0 0
        %2046 = vmatprep.subr.bf16.mxu0 0
        %2047 = vmatpush1.bf16.msra.mxu0 0
        %2048 = vmatprep.subr.bf16.mxu0 0
        %2049 = vmatpush1.bf16.msra.mxu0 0
        %2050 = vmatprep.subr.bf16.mxu0 0
        %2051 = vmatpush1.bf16.msra.mxu0 0
        %2052 = vmatprep.subr.bf16.mxu0 0
        %2053 = vmatpush1.bf16.msra.mxu0 0
        %2054 = vmatprep.subr.bf16.mxu0 0
        %2055 = vmatpush1.bf16.msra.mxu0 0
        %2056 = vmatprep.subr.bf16.mxu0 0
        %2057 = vmatpush1.bf16.msra.mxu0 0
        %2058 = vmatprep.subr.bf16.mxu0 0
        %2059 = vmatpush1.bf16.msra.mxu0 0
        %2060 = vmatprep.subr.bf16.mxu0 0
        %2061 = vmatpush1.bf16.msra.mxu0 0
        %2062 = vmatprep.subr.bf16.mxu0 0
        %2063 = vmatpush1.bf16.msra.mxu0 0
        %2064 = vmatprep.subr.bf16.mxu0 0
        %2065 = vmatpush1.bf16.msra.mxu0 0
        %2066 = vmatprep.subr.bf16.mxu0 0
        %2067 = vmatpush1.bf16.msra.mxu0 0
        %2068 = vmatprep.subr.bf16.mxu0 0
        %2069 = vmatpush1.bf16.msra.mxu0 0
        %2070 = vmatprep.mubr.bf16.mxu0 0
        %2071 = vmatmul.mubr.bf16.gmra.mrb[0].mxu0 %v2036
        %v2072 = vpop.f32.mrb[0].mxu0
        %v2073 = vadd.f32 %v2021, %v2072
        %v2074 = vpop.f32.mrb[0].mxu0
        %v2075 = vpop.f32.mrb[0].mxu0
        %v2076 = vadd.f32 %v2021, %v2075
        %v2077 = vpop.f32.mrb[0].mxu0
        %2078 = vdwg.mxu0
        %v2079 = vmax.f32 %v2073, 0.0
        %v2080 = vmax.f32 %v2076, 0.0
        %v2081 = vpack.c.bf16 %v2080, %v2079
        %v2082 = vld [vmem:[%s782] sm:$0xf]
        %v2083 = vld [vmem:[%s782 + $0x4] sm:$0xf]
        %v2084 = vld [vmem:[%s782 + $0x8] sm:$0xf]
        %v2085 = vld [vmem:[%s782 + $0xc] sm:$0xf]
        %v2086 = vld [vmem:[%s782 + $0x10] sm:$0xf]
        %v2087 = vld [vmem:[%s782 + $0x14] sm:$0xf]
        %v2088 = vld [vmem:[%s782 + $0x18] sm:$0xf]
        %v2089 = vld [vmem:[%s782 + $0x1c] sm:$0xf]
        %v2090 = vld [vmem:[%s790] sm:$0x1]
        %v2092 = vlaneseq
        %v2093 = vshrl.u32 %v2092, 7
        %v2094 = vsub.s32 0, %v2093
        %v2095 = vrot.slane %v2090, %v2094
        %v2105 = vunpack.c.l.b16 %v2082
        %v2106 = vunpack.c.l.b16 %v2083
        %v2107 = vunpack.c.l.b16 %v2084
        %v2108 = vunpack.c.l.b16 %v2085
        %v2109 = vunpack.c.l.b16 %v2086
        %v2110 = vunpack.c.l.b16 %v2087
        %v2111 = vunpack.c.l.b16 %v2088
        %v2112 = vunpack.c.l.b16 %v2089
        %v2113 = vpack.c.b16 %v2106, %v2105
        %v2114 = vpack.c.b16 %v2108, %v2107
        %v2115 = vpack.c.b16 %v2110, %v2109
        %v2116 = vpack.c.b16 %v2112, %v2111
        %vm2121 = vcmask 523264
        %v2123 = vsel %vm2121, %v2081, 0
        %2125 = vmatprep.subr.bf16.mxu0 0
        %2126 = vmatpush1.bf16.msra.mxu0 %v2113
        %2127 = vmatprep.subr.bf16.mxu0 0
        %2128 = vmatpush1.bf16.msra.mxu0 %v2114
        %2129 = vmatprep.subr.bf16.mxu0 0
        %2130 = vmatpush1.bf16.msra.mxu0 %v2115
        %2131 = vmatprep.subr.bf16.mxu0 0
        %2132 = vmatpush1.bf16.msra.mxu0 %v2116
        %2133 = vmatprep.subr.bf16.mxu0 0
        %2134 = vmatpush1.bf16.msra.mxu0 0
        %2135 = vmatprep.subr.bf16.mxu0 0
        %2136 = vmatpush1.bf16.msra.mxu0 0
        %2137 = vmatprep.subr.bf16.mxu0 0
        %2138 = vmatpush1.bf16.msra.mxu0 0
        %2139 = vmatprep.subr.bf16.mxu0 0
        %2140 = vmatpush1.bf16.msra.mxu0 0
        %2141 = vmatprep.subr.bf16.mxu0 0
        %2142 = vmatpush1.bf16.msra.mxu0 0
        %2143 = vmatprep.subr.bf16.mxu0 0
        %2144 = vmatpush1.bf16.msra.mxu0 0
        %2145 = vmatprep.subr.bf16.mxu0 0
        %2146 = vmatpush1.bf16.msra.mxu0 0
        %2147 = vmatprep.subr.bf16.mxu0 0
        %2148 = vmatpush1.bf16.msra.mxu0 0
        %2149 = vmatprep.subr.bf16.mxu0 0
        %2150 = vmatpush1.bf16.msra.mxu0 0
        %2151 = vmatprep.subr.bf16.mxu0 0
        %2152 = vmatpush1.bf16.msra.mxu0 0
        %2153 = vmatprep.subr.bf16.mxu0 0
        %2154 = vmatpush1.bf16.msra.mxu0 0
        %2155 = vmatprep.subr.bf16.mxu0 0
        %2156 = vmatpush1.bf16.msra.mxu0 0
        %2157 = vmatprep.mubr.bf16.mxu0 0
        %2158 = vmatmul.mubr.bf16.gmra.mrb[0].mxu0 %v2123
        %v2159 = vpop.f32.mrb[0].mxu0
        %v2160 = vadd.f32 %v2095, %v2159
        %v2161 = vpop.f32.mrb[0].mxu0
        %v2162 = vpop.f32.mrb[0].mxu0
        %v2163 = vadd.f32 %v2095, %v2162
        %v2164 = vpop.f32.mrb[0].mxu0
        %2165 = vdwg.mxu0
        %v2166 = vadd.f32 %v2009, %v2160
        %v2167 = vadd.f32 %v2010, %v2163
        %v2168 = vld [vmem:[%s798] sm:$0x1]
        %v2169 = vld [vmem:[%s806] sm:$0x1]
        %v2170 = vsel %vm934, %v2166, 0.0
        %2171 = vadd.xlane.f32.xlu0 %v2170
        %v2172 = vpop.xlane.xlu0 %2171
        %v2173 = vsel %vm934, %v2167, 0.0
        %2174 = vadd.xlane.f32.xlu0 %v2173
        %v2175 = vpop.xlane.xlu0 %2174
        %v2176 = vmul.f32 %v2172, %v1974
        %v2177 = vmul.f32 %v2175, %v1974
        %v2178 = vsub.f32 %v2166, %v2176
        %v2179 = vsub.f32 %v2167, %v2177
        %v2180 = vmul.f32 %v2178, %v2178
        %v2181 = vmul.f32 %v2179, %v2179
        %v2182 = vsel %vm934, %v2180, 0.0
        %2183 = vadd.xlane.f32.xlu0 %v2182
        %v2184 = vpop.xlane.xlu0 %2183
        %v2185 = vsel %vm934, %v2181, 0.0
        %2186 = vadd.xlane.f32.xlu0 %v2185
        %v2187 = vpop.xlane.xlu0 %2186
        %v2188 = vmul.f32 %v2184, %v1974
        %v2189 = vmul.f32 %v2187, %v1974
        %v2190 = vadd.f32 %v2188, 1e-05
        %v2191 = vadd.f32 %v2189, 1e-05
        %v2192 = vrsqrt.pop %v2190
        %v2193 = vrsqrt.pop %v2191
        %v2194 = vmul.f32 %v2178, %v2192
        %v2195 = vmul.f32 %v2179, %v2193
        %v2197 = vlaneseq
        %v2198 = vshrl.u32 %v2197, 7
        %v2199 = vsub.s32 0, %v2198
        %v2200 = vrot.slane %v2168, %v2199
        %v2202 = vmul.f32 %v2194, %v2200
        %v2203 = vmul.f32 %v2195, %v2200
        %v2205 = vlaneseq
        %v2206 = vshrl.u32 %v2205, 7
        %v2207 = vsub.s32 0, %v2206
        %v2208 = vrot.slane %v2169, %v2207
        %v2210 = vadd.f32 %v2202, %v2208
        %v2211 = vadd.f32 %v2203, %v2208
        %2212 = vst.msk [vmem:[#allocation20] sm:$0xff] %vm934, %v2210
        %2213 = vst.msk [vmem:[#allocation20 + $0x8] sm:$0xff] %vm934, %v2211
        // Predicated region
        $region137: #{tpu_custom_call.1} parent=75 // pred_check
          %p2214 = pneg %p422
        $region138: #{tpu_custom_call.1} parent=75 // pred_check_branch
          %2216 = sbr.rel (%p2214) target = $region140
        $region139: #{tpu_custom_call.1} parent=75 // pred_region
          %s2217 = smul.u32 2, %s32
          %s2219 = ssub.s32 256, 256
          %2220 = vsyncadd [#allocation5], %s2219
          %s2221 = smul.addr %s2217, 128
          %s2222 = scalar_lea.hbm %s14, %s2221
          %s2223 = sshll.u32 [#allocation20], 4
          %s2224 = int_to_ptr.vmem [resolvable:$true] %s2223
          %2229 = dma.vmem_to_hbm [thread:$0]  %s2224, 256, %s2222, [#allocation5], 128, 128, 8
        $region140: #{tpu_custom_call.1} parent=75 // pred_fallthru
          _
        // Predicated region
        $region141: #{tpu_custom_call.1} parent=75 // pred_check
          %p2230 = pneg %p422
        $region142: #{tpu_custom_call.1} parent=75 // pred_check_branch
          %2232 = sbr.rel (%p2230) target = $region144
        $region143: #{tpu_custom_call.1} parent=75 // pred_region
          %2233 = dma.done [#allocation5], 256
        $region144: #{tpu_custom_call.1} parent=75 // pred_fallthru
          _
      $region76: #{tpu_custom_call.1} parent=5 // pred_fallthru
        _
      %p2234 = scmp.le.s32.totalorder 2, %s23
      // Predicated region
      $region145: #{tpu_custom_call.1} parent=5 // pred_check
        %p2235 = pneg %p2234
      $region146: #{tpu_custom_call.1} parent=5 // pred_check_branch
        %2237 = sbr.rel (%p2235) target = $region148
      $region147: #{tpu_custom_call.1} parent=5 // pred_region
        %s2238 = ssub.s32 %s23, 2
      $region148: #{tpu_custom_call.1} parent=5 // pred_fallthru
        _
    $region6: #{tpu_custom_call.1} parent=1 // loop_footer
      %s27 = sadd.s32 1, %s23
    $region7: #{tpu_custom_call.1} parent=1 // loop_footer_branch
      %22 = sbr.rel target = $region3
    $region8: #{tpu_custom_call.1} parent=1 // loop_exit
      _
    %2239 = vsyncpa [#allocation4], 1
    %s2240 = scalar_lea.sflag [#allocation4], 1
    %2241 = vsyncpa %s2240, 1
    %2242 = vsyncpa [#allocation7], 1
    %2243 = vsyncpa [#allocation5], 1
    %s2244 = scalar_lea.sflag [#allocation5], 1
    %2245 = vsyncpa %s2244, 1

</llo_original>
